<compile_context>
chip_gen: v6e
topology: v6e:2x2x1
jax: 0.10.0
libtpu: 0.0.40
codegen_flags: <defaults>
</compile_context>

<pallas_src>
import functools

import jax
import jax.numpy as jnp
from jax.experimental import pallas as pl
from jax.experimental.pallas import tpu as pltpu


def _round_up(x, m):
    return (x + m - 1) // m * m


# ----------------------------------------------------------------------------
# Fused per-step kernel body, iterated over grid=(num_steps,)
# ----------------------------------------------------------------------------
def _decode_step_kernel(
    # scalar prefetch (SMEM): token ids, consumed by the embedding index_map
    tok_ref,
    # inputs (constant index_map -> DMA'd once and VMEM-resident, except emb_ref
    # whose single row is gathered per step via tok_ref[s])
    s_len_ref,                    # (1,1)    f32 s_length
    emb_ref,                      # (1,1,Ep) embedding row of the current token
    h0_ref, c0_ref, htt0_ref,     # (1,Hp)   initial h / c / h_t_tilde
    enc_ref,                      # (Tp,Hp)  padded encoder outputs
    enc_attn_ref,                 # (Tp,Hp)  enc_pad @ W_attn_enc (precomputed, loop-invariant)
    syn_ref,                      # (Rp,Tp)  gaussian-gated syntax rows (precomputed)
    w_lstm_ref, b_lstm_ref,       # (Zp,4Hp) fused LSTM weight, (1,4Hp) folded bias
    w_hproj_ref,                  # (Hp,3Hp) fused [p_t_dense | attn-hidden | attn_combine-h]
    v_pd_ref,                     # (1,Hp)   p_t_dot
    b_attn_ref, v_attn_ref,       # (1,Hp), (1,Hp)
    w_comb_ctx_ref, b_comb_ref,   # (Hp,Hp), (1,Hp) attn_combine (context part)
    w_out_ref, b_out_ref,         # (Hp,Op), (1,Op)
    # outputs
    logp_ref,                     # (1,1,Op) per-step log-probs
    aw_ref,                       # (1,1,Tp) per-step attention weights
    htt_seq_ref,                  # (1,1,Hp) per-step h_t_tilde
    hf_ref, cf_ref,               # (1,Hp)   final hidden / cell (constant block)
    # scratch: recurrent state, persists across grid steps
    h_sc, c_sc, htt_sc,
    *, Hp, T_valid, O_valid, R_valid):
    del tok_ref  # only used by the index_maps
    f32 = jnp.float32
    NEG = f32(-1e30)
    s = pl.program_id(0)

    # ---- initialize the carried state at step 0 ----------------------------------
    @pl.when(s == 0)
    def _():
        h_sc[...] = h0_ref[...]
        c_sc[...] = c0_ref[...]
        htt_sc[...] = htt0_ref[...]

    emb = emb_ref[...].reshape(1, -1)            # (1, Ep)
    h_prev = h_sc[...]
    c_prev = c_sc[...]
    htt_prev = htt_sc[...]

    # ---- LSTM step: one fused (1, Zp) @ (Zp, 4*Hp) matmul, gate order i,f,g,o ----
    z = jnp.concatenate([emb, htt_prev, h_prev], axis=-1)          # (1, Zp)
    gates = jnp.dot(z, w_lstm_ref[...],
                    preferred_element_type=f32) + b_lstm_ref[...]  # (1, 4*Hp)
    i_g = jax.nn.sigmoid(gates[:, 0 * Hp:1 * Hp])
    f_g = jax.nn.sigmoid(gates[:, 1 * Hp:2 * Hp])
    g_g = jnp.tanh(gates[:, 2 * Hp:3 * Hp])
    o_g = jax.nn.sigmoid(gates[:, 3 * Hp:4 * Hp])
    c_new = f_g * c_prev + i_g * g_g
    h_t = o_g * jnp.tanh(c_new)
    h_sc[...] = h_t
    c_sc[...] = c_new
    hf_ref[...] = h_t
    cf_ref[...] = c_new

    # ---- fused h_t projections: [p_t_dense | attn hidden-part | attn_combine h-part]
    hd = jnp.dot(h_t, w_hproj_ref[...], preferred_element_type=f32)  # (1, 3*Hp)
    pd = jnp.tanh(hd[:, 0 * Hp:1 * Hp])
    hid_part = hd[:, 1 * Hp:2 * Hp] + b_attn_ref[...]
    comb_h = hd[:, 2 * Hp:3 * Hp]

    # ---- p_t = round(s_length * sigmoid(p_t_dot(tanh(p_t_dense(h_t))))) ----------
    pt_logit = jnp.sum(pd * v_pd_ref[...], axis=-1, keepdims=True)   # (1,1)
    pt_f = s_len_ref[...] * jax.nn.sigmoid(pt_logit)
    pt_i = jnp.clip((pt_f + 0.5).astype(jnp.int32), 0, R_valid - 1)  # round-half-up

    # ---- syntax gaussian vector: one-hot row select of precomputed table ---------
    Rp, Tp = syn_ref.shape
    row_ids = jax.lax.broadcasted_iota(jnp.int32, (Rp, Tp), 0)
    syn_vec = jnp.sum(jnp.where(row_ids == pt_i, syn_ref[...], 0.0),
                      axis=0, keepdims=True)                         # (1, Tp)

    # ---- concat-score attention over encoder_outputs (enc part precomputed) ------
    energy = jnp.maximum(enc_attn_ref[...] + hid_part, 0.0)          # (Tp, Hp)
    e = jax.lax.dot_general(v_attn_ref[...], energy,
                            dimension_numbers=(((1,), (1,)), ((), ())),
                            preferred_element_type=f32)              # (1, Tp)
    lane_ids = jax.lax.broadcasted_iota(jnp.int32, (1, Tp), 1)
    t_mask = lane_ids < T_valid
    e = jnp.where(t_mask, e, NEG)
    e_max = jnp.max(e, axis=-1, keepdims=True)
    p = jnp.exp(e - e_max)
    attn = p / jnp.sum(p, axis=-1, keepdims=True)                    # softmax(dim=0)

    # ---- syntax-reweighted attention + renormalize --------------------------------
    aw = attn * syn_vec
    aw = aw / jnp.maximum(jnp.sum(aw, axis=-1, keepdims=True), 1e-30)
    aw_ref[...] = aw.reshape(1, 1, Tp)

    # ---- context + attn_combine (split matmuls, no lane concat) -------------------
    context = jnp.dot(aw, enc_ref[...], preferred_element_type=f32)  # (1, Hp)
    h_tt = jnp.tanh(jnp.dot(context, w_comb_ctx_ref[...],
                            preferred_element_type=f32) + comb_h + b_comb_ref[...])
    htt_sc[...] = h_tt
    htt_seq_ref[...] = h_tt.reshape(1, 1, Hp)

    # ---- output projection + log_softmax -------------------------------------------
    logits = jnp.dot(h_tt, w_out_ref[...], preferred_element_type=f32) + b_out_ref[...]
    Op = logits.shape[-1]
    o_ids = jax.lax.broadcasted_iota(jnp.int32, (1, Op), 1)
    logits = jnp.where(o_ids < O_valid, logits, NEG)
    m = jnp.max(logits, axis=-1, keepdims=True)
    lse = jnp.log(jnp.sum(jnp.exp(logits - m), axis=-1, keepdims=True)) + m
    logp_ref[...] = (logits - lse).reshape(1, 1, Op)


# ----------------------------------------------------------------------------
# Parameters (logical, (in, out) layout) + one-time packing/padding
# ----------------------------------------------------------------------------
def init_params(key, hidden_size, output_size):
    H, O = hidden_size, output_size
    E = H
    ks = jax.random.split(key, 14)

    def u(k, shape, fan_in):
        s = 1.0 / (fan_in ** 0.5)
        return jax.random.uniform(k, shape, jnp.float32, -s, s)

    return {
        "embedding": jax.random.normal(ks[0], (O, E), jnp.float32),
        # nn.LSTM(E+H, H): gate order i, f, g, o; stored (in, out) so x @ W works
        "w_ih": u(ks[1], (E + H, 4 * H), H),
        "w_hh": u(ks[2], (H, 4 * H), H),
        "b_ih": u(ks[3], (4 * H,), H),
        "b_hh": u(ks[4], (4 * H,), H),
        "w_pd": u(ks[5], (H, H), H),            # p_t_dense (no bias)
        "w_pdot": u(ks[6], (H,), H),            # p_t_dot   (no bias)
        "w_attn": u(ks[7], (2 * H, H), 2 * H),  # Attention.attn, cat order [hidden, enc]
        "b_attn": u(ks[8], (H,), 2 * H),
        "v_attn": u(ks[9], (H,), H),            # Attention.v
        "w_comb": u(ks[10], (2 * H, H), 2 * H),  # attn_combine, cat order [context, h_t]
        "b_comb": u(ks[11], (H,), 2 * H),
        "w_out": u(ks[12], (H, O), H),
        "b_out": u(ks[13], (O,), H),
    }


def pack_params(p, hidden_size, output_size, max_length):
    """Fuse + zero-pad weights once (outside jit); lane dims multiple-of-128."""
    del max_length
    H, O = hidden_size, output_size
    E = H
    Hp, Op, Ep = _round_up(H, 128), _round_up(O, 128), _round_up(E, 128)
    Zp = Ep + 2 * Hp
    f32 = jnp.float32

    def pad2(a, r, c):
        out = jnp.zeros((r, c), f32)
        return out.at[:a.shape[0], :a.shape[1]].set(a.astype(f32))

    # embedding stored as (O, 1, Ep): one lane-padded row per token id so the
    # kernel can DMA exactly one row per step via a data-dependent index_map
    emb3 = jnp.zeros((O, 1, Ep), f32).at[:, 0, :E].set(p["embedding"].astype(f32))

    # fused LSTM weight rows = [emb block(Ep) ; h_t_tilde block(Hp) ; h block(Hp)]
    w_lstm = jnp.zeros((Zp, 4 * Hp), f32)
    b_lstm = jnp.zeros((1, 4 * Hp), f32)
    b_cat = (p["b_ih"] + p["b_hh"]).reshape(1, 4 * H)
    off_t, off_h = Ep, Ep + Hp
    for g in range(4):
        w_lstm = w_lstm.at[0:E, g * Hp:g * Hp + H].set(p["w_ih"][:E, g * H:(g + 1) * H])
        w_lstm = w_lstm.at[off_t:off_t + H, g * Hp:g * Hp + H].set(
            p["w_ih"][E:E + H, g * H:(g + 1) * H])
        w_lstm = w_lstm.at[off_h:off_h + H, g * Hp:g * Hp + H].set(
            p["w_hh"][:, g * H:(g + 1) * H])
        b_lstm = b_lstm.at[:, g * Hp:g * Hp + H].set(b_cat[:, g * H:(g + 1) * H])

    # fused h_t projection: [p_t_dense | attn(hidden part) | attn_combine(h_t part)]
    w_hproj = jnp.zeros((Hp, 3 * Hp), f32)
    w_hproj = w_hproj.at[:H, 0 * Hp:0 * Hp + H].set(p["w_pd"])
    w_hproj = w_hproj.at[:H, 1 * Hp:1 * Hp + H].set(p["w_attn"][:H])
    w_hproj = w_hproj.at[:H, 2 * Hp:2 * Hp + H].set(p["w_comb"][H:2 * H])

    return {
        "embedding": emb3,
        "w_lstm": w_lstm, "b_lstm": b_lstm,
        "w_hproj": w_hproj,
        "v_pd": pad2(p["w_pdot"].reshape(1, H), 1, Hp),
        "w_attn_enc": pad2(p["w_attn"][H:2 * H], Hp, Hp),   # used in wrapper precompute
        "b_attn": pad2(p["b_attn"].reshape(1, H), 1, Hp),
        "v_attn": pad2(p["v_attn"].reshape(1, H), 1, Hp),
        "w_comb_ctx": pad2(p["w_comb"][:H], Hp, Hp),
        "b_comb": pad2(p["b_comb"].reshape(1, H), 1, Hp),
        "w_out": pad2(p["w_out"], Hp, Op),
        "b_out": pad2(p["b_out"].reshape(1, O), 1, Op),
    }


# ----------------------------------------------------------------------------
# Decode wrapper: the whole token loop is one pallas_call
# ----------------------------------------------------------------------------
def make_decoder(hidden_size, output_size, max_length, constraint=4.0, sigma=2.0):
    H, O, T = hidden_size, output_size, max_length
    E = H
    Hp, Op, Tp, Ep = (_round_up(H, 128), _round_up(O, 128),
                      _round_up(T, 128), _round_up(E, 128))
    f32 = jnp.float32

    @jax.jit
    def decode(packed, tokens, hidden, h_t_tilde, encoder_outputs, s_length, syntax_matrix):
        S = tokens.shape[0]
        R = syntax_matrix.shape[0]
        Rp = max(_round_up(R, 8), 8)

        h0, c0 = hidden
        h0p = jnp.zeros((1, Hp), f32).at[0, :H].set(h0.reshape(-1))
        c0p = jnp.zeros((1, Hp), f32).at[0, :H].set(c0.reshape(-1))
        htt0p = jnp.zeros((1, Hp), f32).at[0, :H].set(h_t_tilde.reshape(-1))

        # loop-invariant precompute (once per decode call, not per token)
        enc_pad = jnp.zeros((Tp, Hp), f32).at[:T, :H].set(encoder_outputs.astype(f32))
        enc_attn = enc_pad @ packed["w_attn_enc"]                        # (Tp, Hp)
        dist = jnp.full((Rp, Tp), jnp.inf, f32).at[:R, :T].set(syntax_matrix.astype(f32))
        dist = jnp.where(dist > constraint, jnp.inf, dist)
        syn_gauss = jnp.exp(-(dist * dist) * (1.0 / (2.0 * sigma * sigma)))  # (Rp, Tp)

        s_len = jnp.asarray(s_length, f32).reshape(1, 1)
        tokens_i = tokens.astype(jnp.int32)

        kernel = functools.partial(_decode_step_kernel, Hp=Hp, T_valid=T,
                                   O_valid=O, R_valid=R)

        def const2(shape):
            return pl.BlockSpec(shape, lambda s, tok: (0, 0))

        grid_spec = pltpu.PrefetchScalarGridSpec(
            num_scalar_prefetch=1,
            grid=(S,),
            in_specs=[
                const2((1, 1)),                                             # s_len
                pl.BlockSpec((1, 1, Ep), lambda s, tok: (tok[s], 0, 0)),    # embedding row
                const2((1, Hp)), const2((1, Hp)), const2((1, Hp)),          # h0, c0, htt0
                const2((Tp, Hp)), const2((Tp, Hp)),                         # enc, enc_attn
                const2((Rp, Tp)),                                           # syn_gauss
                const2((Ep + 2 * Hp, 4 * Hp)), const2((1, 4 * Hp)),         # w_lstm, b_lstm
                const2((Hp, 3 * Hp)),                                       # w_hproj
                const2((1, Hp)), const2((1, Hp)), const2((1, Hp)),          # v_pd, b_attn, v_attn
                const2((Hp, Hp)), const2((1, Hp)),                          # w_comb_ctx, b_comb
                const2((Hp, Op)), const2((1, Op)),                          # w_out, b_out
            ],
            out_specs=[
                pl.BlockSpec((1, 1, Op), lambda s, tok: (s, 0, 0)),
                pl.BlockSpec((1, 1, Tp), lambda s, tok: (s, 0, 0)),
                pl.BlockSpec((1, 1, Hp), lambda s, tok: (s, 0, 0)),
                pl.BlockSpec((1, Hp), lambda s, tok: (0, 0)),
                pl.BlockSpec((1, Hp), lambda s, tok: (0, 0)),
            ],
            scratch_shapes=[pltpu.VMEM((1, Hp), f32) for _ in range(3)],
        )

        logp_p, aw_p, htt_p, h_p, c_p = pl.pallas_call(
            kernel,
            grid_spec=grid_spec,
            out_shape=(
                jax.ShapeDtypeStruct((S, 1, Op), f32),   # per-step log-probs
                jax.ShapeDtypeStruct((S, 1, Tp), f32),   # per-step attention weights
                jax.ShapeDtypeStruct((S, 1, Hp), f32),   # per-step h_t_tilde
                jax.ShapeDtypeStruct((1, Hp), f32),      # final h
                jax.ShapeDtypeStruct((1, Hp), f32),      # final c
            ),
            compiler_params=pltpu.CompilerParams(dimension_semantics=("arbitrary",)),
        )(tokens_i, s_len, packed["embedding"], h0p, c0p, htt0p,
          enc_pad, enc_attn, syn_gauss,
          packed["w_lstm"], packed["b_lstm"], packed["w_hproj"], packed["v_pd"],
          packed["b_attn"], packed["v_attn"], packed["w_comb_ctx"], packed["b_comb"],
          packed["w_out"], packed["b_out"])

        logp_seq = logp_p[:, 0, :O]                       # (S, O)
        aw_seq = aw_p[:, 0, :T]                           # (S, T)
        htt_f = htt_p[-1, :, :H].reshape(1, 1, H)
        h_f = h_p[:, :H].reshape(1, 1, H)
        c_f = c_p[:, :H].reshape(1, 1, H)
        return logp_seq, (h_f, c_f), htt_f, aw_seq

    return decode


# ----------------------------------------------------------------------------
# Pure-JAX reference mirroring the PyTorch forward (dropout = identity)
# ----------------------------------------------------------------------------
def _reference_forward(p, token, hidden, h_t_tilde, enc, s_length, syntax_matrix,
                       constraint=4.0, sigma=2.0):
    h0, c0 = hidden
    H = p["w_hh"].shape[0]
    emb = p["embedding"][token].reshape(1, 1, -1)
    x = jnp.concatenate([emb, h_t_tilde], axis=-1).reshape(1, -1)
    hh = h0.reshape(1, -1)
    cc = c0.reshape(1, -1)
    gates = x @ p["w_ih"] + p["b_ih"] + hh @ p["w_hh"] + p["b_hh"]
    i = jax.nn.sigmoid(gates[:, 0:H]); f = jax.nn.sigmoid(gates[:, H:2 * H])
    g = jnp.tanh(gates[:, 2 * H:3 * H]); o = jax.nn.sigmoid(gates[:, 3 * H:4 * H])
    c1 = f * cc + i * g
    h1 = o * jnp.tanh(c1)
    h_t = h1

    pt_f = s_length * jax.nn.sigmoid(jnp.tanh(h_t @ p["w_pd"]) @ p["w_pdot"])
    p_t = jnp.floor(pt_f + 0.5).astype(jnp.int32)[0]
    dist = syntax_matrix[p_t]
    dist = jnp.where(dist > constraint, jnp.inf, dist)
    syntax_vec = jnp.exp(-dist ** 2 / (2.0 * sigma * sigma))

    h_rep = jnp.broadcast_to(h_t, (enc.shape[0], H))
    energy = jax.nn.relu(jnp.concatenate([h_rep, enc], axis=1) @ p["w_attn"] + p["b_attn"])
    e = energy @ p["v_attn"]
    attn = jax.nn.softmax(e, axis=0)
    aw = (attn * syntax_vec).reshape(1, -1)
    aw = aw / jnp.sum(aw, axis=1)
    context = aw @ enc
    h_tt = jnp.tanh(jnp.concatenate([context, h_t], axis=-1) @ p["w_comb"] + p["b_comb"])
    logits = h_tt @ p["w_out"] + p["b_out"]
    logp = jax.nn.log_softmax(logits, axis=-1)
    return logp, (h1.reshape(1, 1, H), c1.reshape(1, 1, H)), h_tt.reshape(1, 1, H), aw


# ----------------------------------------------------------------------------
if __name__ == "__main__":
    hidden_size, output_size, max_length = 32, 64, 16
    num_steps = 6

    key = jax.random.PRNGKey(0)
    pk, tk, hk, ck, ttk, ek = jax.random.split(key, 6)
    params = init_params(pk, hidden_size, output_size)
    packed = pack_params(params, hidden_size, output_size, max_length)
    decode = make_decoder(hidden_size, output_size, max_length)

    tokens = jax.random.randint(tk, (num_steps,), 0, output_size, dtype=jnp.int32)
    h0 = 0.1 * jax.random.normal(hk, (1, 1, hidden_size), jnp.float32)
    c0 = 0.1 * jax.random.normal(ck, (1, 1, hidden_size), jnp.float32)
    h_t_tilde = 0.1 * jax.random.normal(ttk, (1, 1, hidden_size), jnp.float32)
    encoder_outputs = jax.random.normal(ek, (max_length, hidden_size), jnp.float32)
    s_length = 10.0
    ii = jnp.arange(max_length)
    syntax_matrix = jnp.abs(ii[:, None] - ii[None, :]).astype(jnp.float32)  # (T, T)

    logp_seq, (h_f, c_f), htt_f, aw_seq = decode(
        packed, tokens, (h0, c0), h_t_tilde, encoder_outputs, s_length, syntax_matrix)
    jax.block_until_ready((logp_seq, h_f, c_f, htt_f, aw_seq))

    # step-by-step pure-JAX reference (each step == one PyTorch module forward)
    h, c, htt = h0, c0, h_t_tilde
    ref_logps, ref_aws = [], []
    for s in range(num_steps):
        lp, (h, c), htt, aw = _reference_forward(
            params, tokens[s], (h, c), htt, encoder_outputs, s_length, syntax_matrix)
        ref_logps.append(lp)
        ref_aws.append(aw)
    ref_logp = jnp.concatenate(ref_logps, axis=0)   # (S, O)
    ref_aw = jnp.concatenate(ref_aws, axis=0)       # (S, T)

    assert logp_seq.shape == (num_steps, output_size)
    assert aw_seq.shape == (num_steps, max_length)
    assert h_f.shape == (1, 1, hidden_size) and c_f.shape == (1, 1, hidden_size)
    assert htt_f.shape == (1, 1, hidden_size)
    assert jnp.allclose(logp_seq, ref_logp, atol=1e-4, rtol=1e-4)
    assert jnp.allclose(aw_seq, ref_aw, atol=1e-4, rtol=1e-4)
    assert jnp.allclose(h_f, h, atol=1e-4, rtol=1e-4)
    assert jnp.allclose(c_f, c, atol=1e-4, rtol=1e-4)
    assert jnp.allclose(htt_f, htt, atol=1e-4, rtol=1e-4)

    print("KERNEL_OK")
</pallas_src>

<mosaic_0001>
module attributes {stable_mosaic.version = 11 : i64} {
  func.func @_decode_step_kernel(%arg0: i32, %arg1: memref<6xi32, #tpu.memory_space<smem>>, %arg2: memref<1x1xf32, #tpu.memory_space<vmem>>, %arg3: memref<1x1x128xf32, #tpu.memory_space<vmem>>, %arg4: memref<1x128xf32, #tpu.memory_space<vmem>>, %arg5: memref<1x128xf32, #tpu.memory_space<vmem>>, %arg6: memref<1x128xf32, #tpu.memory_space<vmem>>, %arg7: memref<128x128xf32, #tpu.memory_space<vmem>>, %arg8: memref<128x128xf32, #tpu.memory_space<vmem>>, %arg9: memref<16x128xf32, #tpu.memory_space<vmem>>, %arg10: memref<384x512xf32, #tpu.memory_space<vmem>>, %arg11: memref<1x512xf32, #tpu.memory_space<vmem>>, %arg12: memref<128x384xf32, #tpu.memory_space<vmem>>, %arg13: memref<1x128xf32, #tpu.memory_space<vmem>>, %arg14: memref<1x128xf32, #tpu.memory_space<vmem>>, %arg15: memref<1x128xf32, #tpu.memory_space<vmem>>, %arg16: memref<128x128xf32, #tpu.memory_space<vmem>>, %arg17: memref<1x128xf32, #tpu.memory_space<vmem>>, %arg18: memref<128x128xf32, #tpu.memory_space<vmem>>, %arg19: memref<1x128xf32, #tpu.memory_space<vmem>>, %arg20: memref<1x1x128xf32, #tpu.memory_space<vmem>>, %arg21: memref<1x1x128xf32, #tpu.memory_space<vmem>>, %arg22: memref<1x1x128xf32, #tpu.memory_space<vmem>>, %arg23: memref<1x128xf32, #tpu.memory_space<vmem>>, %arg24: memref<1x128xf32, #tpu.memory_space<vmem>>, %arg25: memref<1x128xf32, #tpu.memory_space<vmem>>, %arg26: memref<1x128xf32, #tpu.memory_space<vmem>>, %arg27: memref<1x128xf32, #tpu.memory_space<vmem>>) attributes {dimension_semantics = [#tpu.dimension_semantics<arbitrary>], iteration_bounds = array<i64: 6>, scalar_prefetch = 1 : i64, scratch_operands = 3 : i64, tpu.core_type = #tpu.core_type<tc>, window_params = [{pipeline_mode = #tpu.pipeline_mode<synchronous>, transform_indices = @transform_0, window_bounds = array<i64: 1, 1>}, {transform_indices = @transform_1, window_bounds = array<i64: 1, 1, 128>}, {pipeline_mode = #tpu.pipeline_mode<synchronous>, transform_indices = @transform_2, window_bounds = array<i64: 1, 128>}, {pipeline_mode = #tpu.pipeline_mode<synchronous>, transform_indices = @transform_3, window_bounds = array<i64: 1, 128>}, {pipeline_mode = #tpu.pipeline_mode<synchronous>, transform_indices = @transform_4, window_bounds = array<i64: 1, 128>}, {pipeline_mode = #tpu.pipeline_mode<synchronous>, transform_indices = @transform_5, window_bounds = array<i64: 128, 128>}, {pipeline_mode = #tpu.pipeline_mode<synchronous>, transform_indices = @transform_6, window_bounds = array<i64: 128, 128>}, {pipeline_mode = #tpu.pipeline_mode<synchronous>, transform_indices = @transform_7, window_bounds = array<i64: 16, 128>}, {pipeline_mode = #tpu.pipeline_mode<synchronous>, transform_indices = @transform_8, window_bounds = array<i64: 384, 512>}, {pipeline_mode = #tpu.pipeline_mode<synchronous>, transform_indices = @transform_9, window_bounds = array<i64: 1, 512>}, {pipeline_mode = #tpu.pipeline_mode<synchronous>, transform_indices = @transform_10, window_bounds = array<i64: 128, 384>}, {pipeline_mode = #tpu.pipeline_mode<synchronous>, transform_indices = @transform_11, window_bounds = array<i64: 1, 128>}, {pipeline_mode = #tpu.pipeline_mode<synchronous>, transform_indices = @transform_12, window_bounds = array<i64: 1, 128>}, {pipeline_mode = #tpu.pipeline_mode<synchronous>, transform_indices = @transform_13, window_bounds = array<i64: 1, 128>}, {pipeline_mode = #tpu.pipeline_mode<synchronous>, transform_indices = @transform_14, window_bounds = array<i64: 128, 128>}, {pipeline_mode = #tpu.pipeline_mode<synchronous>, transform_indices = @transform_15, window_bounds = array<i64: 1, 128>}, {pipeline_mode = #tpu.pipeline_mode<synchronous>, transform_indices = @transform_16, window_bounds = array<i64: 128, 128>}, {pipeline_mode = #tpu.pipeline_mode<synchronous>, transform_indices = @transform_17, window_bounds = array<i64: 1, 128>}, {transform_indices = @transform_18, window_bounds = array<i64: 1, 1, 128>}, {transform_indices = @transform_19, window_bounds = array<i64: 1, 1, 128>}, {transform_indices = @transform_20, window_bounds = array<i64: 1, 1, 128>}, {pipeline_mode = #tpu.pipeline_mode<synchronous>, transform_indices = @transform_21, window_bounds = array<i64: 1, 128>}, {pipeline_mode = #tpu.pipeline_mode<synchronous>, transform_indices = @transform_22, window_bounds = array<i64: 1, 128>}]} {
    %c0_i32 = arith.constant 0 : i32
    %0 = arith.cmpi eq, %arg0, %c0_i32 : i32
    %1 = arith.extui %0 : i1 to i32
    %c0_i32_0 = arith.constant 0 : i32
    %2 = arith.cmpi ne, %1, %c0_i32_0 : i32
    scf.if %2 {
      %c0_79 = arith.constant 0 : index
      %c0_80 = arith.constant 0 : index
      %139 = vector.load %arg4[%c0_79, %c0_80] : memref<1x128xf32, #tpu.memory_space<vmem>>, vector<1x128xf32>
      %c0_81 = arith.constant 0 : index
      %c0_82 = arith.constant 0 : index
      %140 = vector.load %arg25[%c0_81, %c0_82] : memref<1x128xf32, #tpu.memory_space<vmem>>, vector<1x128xf32>
      tpu.vector_store %arg25[%c0_81, %c0_82], %139 {strides = array<i32>} : memref<1x128xf32, #tpu.memory_space<vmem>>, vector<1x128xf32>,
      %c0_83 = arith.constant 0 : index
      %c0_84 = arith.constant 0 : index
      %141 = vector.load %arg5[%c0_83, %c0_84] : memref<1x128xf32, #tpu.memory_space<vmem>>, vector<1x128xf32>
      %c0_85 = arith.constant 0 : index
      %c0_86 = arith.constant 0 : index
      %142 = vector.load %arg26[%c0_85, %c0_86] : memref<1x128xf32, #tpu.memory_space<vmem>>, vector<1x128xf32>
      tpu.vector_store %arg26[%c0_85, %c0_86], %141 {strides = array<i32>} : memref<1x128xf32, #tpu.memory_space<vmem>>, vector<1x128xf32>,
      %c0_87 = arith.constant 0 : index
      %c0_88 = arith.constant 0 : index
      %143 = vector.load %arg6[%c0_87, %c0_88] : memref<1x128xf32, #tpu.memory_space<vmem>>, vector<1x128xf32>
      %c0_89 = arith.constant 0 : index
      %c0_90 = arith.constant 0 : index
      %144 = vector.load %arg27[%c0_89, %c0_90] : memref<1x128xf32, #tpu.memory_space<vmem>>, vector<1x128xf32>
      tpu.vector_store %arg27[%c0_89, %c0_90], %143 {strides = array<i32>} : memref<1x128xf32, #tpu.memory_space<vmem>>, vector<1x128xf32>,
    } else {
    }
    %c0 = arith.constant 0 : index
    %c0_1 = arith.constant 0 : index
    %c0_2 = arith.constant 0 : index
    %3 = vector.load %arg3[%c0, %c0_1, %c0_2] : memref<1x1x128xf32, #tpu.memory_space<vmem>>, vector<1x1x128xf32>
    %4 = vector.shape_cast %3 : vector<1x1x128xf32> to vector<1x128xf32>
    %c0_3 = arith.constant 0 : index
    %c0_4 = arith.constant 0 : index
    %5 = vector.load %arg25[%c0_3, %c0_4] : memref<1x128xf32, #tpu.memory_space<vmem>>, vector<1x128xf32>
    %c0_5 = arith.constant 0 : index
    %c0_6 = arith.constant 0 : index
    %6 = vector.load %arg26[%c0_5, %c0_6] : memref<1x128xf32, #tpu.memory_space<vmem>>, vector<1x128xf32>
    %c0_7 = arith.constant 0 : index
    %c0_8 = arith.constant 0 : index
    %7 = vector.load %arg27[%c0_7, %c0_8] : memref<1x128xf32, #tpu.memory_space<vmem>>, vector<1x128xf32>
    %8 = tpu.concatenate %4, %7, %5 in 1 : vector<1x128xf32>, vector<1x128xf32>, vector<1x128xf32> -> vector<1x384xf32>
    %c0_9 = arith.constant 0 : index
    %c0_10 = arith.constant 0 : index
    %9 = vector.load %arg10[%c0_9, %c0_10] : memref<384x512xf32, #tpu.memory_space<vmem>>, vector<384x512xf32>
    %cst = arith.constant dense<0.000000e+00> : vector<1x512xf32>
    %10 = tpu.matmul %8, %9, %cst {dimension_numbers = #tpu.dot_dimension_numbers<[1], [0], [0], [1], [0, 0, 1, 1], [], []>} : vector<1x384xf32>, vector<384x512xf32>, vector<1x512xf32> -> vector<1x512xf32>
    %c0_11 = arith.constant 0 : index
    %c0_12 = arith.constant 0 : index
    %11 = vector.load %arg11[%c0_11, %c0_12] : memref<1x512xf32, #tpu.memory_space<vmem>>, vector<1x512xf32>
    %12 = arith.addf %10, %11 : vector<1x512xf32>
    %13 = vector.extract_strided_slice %12 {offsets = [0, 0], sizes = [1, 128], strides = [1, 1]} : vector<1x512xf32> to vector<1x128xf32>
    %14 = arith.negf %13 : vector<1x128xf32>
    %15 = math.exp %14 : vector<1x128xf32>
    %cst_13 = arith.constant 1.000000e+00 : f32
    %16 = vector.broadcast %cst_13 : f32 to vector<1x128xf32>
    %17 = arith.addf %16, %15 : vector<1x128xf32>
    %18 = arith.divf %16, %17 : vector<1x128xf32>
    %19 = vector.extract_strided_slice %12 {offsets = [0, 128], sizes = [1, 128], strides = [1, 1]} : vector<1x512xf32> to vector<1x128xf32>
    %20 = arith.negf %19 : vector<1x128xf32>
    %21 = math.exp %20 : vector<1x128xf32>
    %cst_14 = arith.constant 1.000000e+00 : f32
    %22 = vector.broadcast %cst_14 : f32 to vector<1x128xf32>
    %23 = arith.addf %22, %21 : vector<1x128xf32>
    %24 = arith.divf %22, %23 : vector<1x128xf32>
    %25 = vector.extract_strided_slice %12 {offsets = [0, 256], sizes = [1, 128], strides = [1, 1]} : vector<1x512xf32> to vector<1x128xf32>
    %26 = math.tanh %25 : vector<1x128xf32>
    %27 = vector.extract_strided_slice %12 {offsets = [0, 384], sizes = [1, 128], strides = [1, 1]} : vector<1x512xf32> to vector<1x128xf32>
    %28 = arith.negf %27 : vector<1x128xf32>
    %29 = math.exp %28 : vector<1x128xf32>
    %cst_15 = arith.constant 1.000000e+00 : f32
    %30 = vector.broadcast %cst_15 : f32 to vector<1x128xf32>
    %31 = arith.addf %30, %29 : vector<1x128xf32>
    %32 = arith.divf %30, %31 : vector<1x128xf32>
    %33 = arith.mulf %24, %6 : vector<1x128xf32>
    %34 = arith.mulf %18, %26 : vector<1x128xf32>
    %35 = arith.addf %33, %34 : vector<1x128xf32>
    %36 = math.tanh %35 : vector<1x128xf32>
    %37 = arith.mulf %32, %36 : vector<1x128xf32>
    %c0_16 = arith.constant 0 : index
    %c0_17 = arith.constant 0 : index
    %38 = vector.load %arg25[%c0_16, %c0_17] : memref<1x128xf32, #tpu.memory_space<vmem>>, vector<1x128xf32>
    tpu.vector_store %arg25[%c0_16, %c0_17], %37 {strides = array<i32>} : memref<1x128xf32, #tpu.memory_space<vmem>>, vector<1x128xf32>,
    %c0_18 = arith.constant 0 : index
    %c0_19 = arith.constant 0 : index
    %39 = vector.load %arg26[%c0_18, %c0_19] : memref<1x128xf32, #tpu.memory_space<vmem>>, vector<1x128xf32>
    tpu.vector_store %arg26[%c0_18, %c0_19], %35 {strides = array<i32>} : memref<1x128xf32, #tpu.memory_space<vmem>>, vector<1x128xf32>,
    %c0_20 = arith.constant 0 : index
    %c0_21 = arith.constant 0 : index
    %40 = vector.load %arg23[%c0_20, %c0_21] : memref<1x128xf32, #tpu.memory_space<vmem>>, vector<1x128xf32>
    tpu.vector_store %arg23[%c0_20, %c0_21], %37 {strides = array<i32>} : memref<1x128xf32, #tpu.memory_space<vmem>>, vector<1x128xf32>,
    %c0_22 = arith.constant 0 : index
    %c0_23 = arith.constant 0 : index
    %41 = vector.load %arg24[%c0_22, %c0_23] : memref<1x128xf32, #tpu.memory_space<vmem>>, vector<1x128xf32>
    tpu.vector_store %arg24[%c0_22, %c0_23], %35 {strides = array<i32>} : memref<1x128xf32, #tpu.memory_space<vmem>>, vector<1x128xf32>,
    %c0_24 = arith.constant 0 : index
    %c0_25 = arith.constant 0 : index
    %42 = vector.load %arg12[%c0_24, %c0_25] : memref<128x384xf32, #tpu.memory_space<vmem>>, vector<128x384xf32>
    %cst_26 = arith.constant dense<0.000000e+00> : vector<1x384xf32>
    %43 = tpu.matmul %37, %42, %cst_26 {dimension_numbers = #tpu.dot_dimension_numbers<[1], [0], [0], [1], [0, 0, 1, 1], [], []>} : vector<1x128xf32>, vector<128x384xf32>, vector<1x384xf32> -> vector<1x384xf32>
    %44 = vector.extract_strided_slice %43 {offsets = [0, 0], sizes = [1, 128], strides = [1, 1]} : vector<1x384xf32> to vector<1x128xf32>
    %45 = math.tanh %44 : vector<1x128xf32>
    %46 = vector.extract_strided_slice %43 {offsets = [0, 128], sizes = [1, 128], strides = [1, 1]} : vector<1x384xf32> to vector<1x128xf32>
    %c0_27 = arith.constant 0 : index
    %c0_28 = arith.constant 0 : index
    %47 = vector.load %arg14[%c0_27, %c0_28] : memref<1x128xf32, #tpu.memory_space<vmem>>, vector<1x128xf32>
    %48 = arith.addf %46, %47 : vector<1x128xf32>
    %49 = vector.extract_strided_slice %43 {offsets = [0, 256], sizes = [1, 128], strides = [1, 1]} : vector<1x384xf32> to vector<1x128xf32>
    %c0_29 = arith.constant 0 : index
    %c0_30 = arith.constant 0 : index
    %50 = vector.load %arg13[%c0_29, %c0_30] : memref<1x128xf32, #tpu.memory_space<vmem>>, vector<1x128xf32>
    %51 = arith.mulf %45, %50 : vector<1x128xf32>
    %cst_31 = arith.constant dense<0.000000e+00> : vector<1xf32>
    %52 = vector.multi_reduction <add>, %51, %cst_31 [1] : vector<1x128xf32> to vector<1xf32>
    %53 = vector.shape_cast %52 : vector<1xf32> to vector<1x1xf32>
    %c0_32 = arith.constant 0 : index
    %c0_33 = arith.constant 0 : index
    %54 = vector.load %arg2[%c0_32, %c0_33] : memref<1x1xf32, #tpu.memory_space<vmem>>, vector<1x1xf32>
    %55 = arith.negf %53 : vector<1x1xf32>
    %56 = math.exp %55 : vector<1x1xf32>
    %cst_34 = arith.constant 1.000000e+00 : f32
    %57 = vector.broadcast %cst_34 : f32 to vector<1x1xf32>
    %58 = arith.addf %57, %56 : vector<1x1xf32>
    %59 = arith.divf %57, %58 : vector<1x1xf32>
    %60 = arith.mulf %54, %59 : vector<1x1xf32>
    %cst_35 = arith.constant 5.000000e-01 : f32
    %61 = vector.broadcast %cst_35 : f32 to vector<1x1xf32>
    %62 = arith.addf %60, %61 : vector<1x1xf32>
    %63 = arith.fptosi %62 : vector<1x1xf32> to vector<1x1xi32>
    %c0_i32_36 = arith.constant 0 : i32
    %c15_i32 = arith.constant 15 : i32
    %64 = vector.broadcast %c0_i32_36 : i32 to vector<1x1xi32>
    %65 = arith.maxsi %64, %63 : vector<1x1xi32>
    %66 = vector.broadcast %c15_i32 : i32 to vector<1x1xi32>
    %67 = arith.minsi %66, %65 : vector<1x1xi32>
    %68 = tpu.iota {dimensions = array<i32: 0>} : vector<16x128xi32>
    %69 = vector.broadcast %67 : vector<1x1xi32> to vector<16x128xi32>
    %70 = arith.cmpi eq, %68, %69 : vector<16x128xi32>
    %c0_37 = arith.constant 0 : index
    %c0_38 = arith.constant 0 : index
    %71 = vector.load %arg9[%c0_37, %c0_38] : memref<16x128xf32, #tpu.memory_space<vmem>>, vector<16x128xf32>
    %cst_39 = arith.constant 0.000000e+00 : f32
    %72 = vector.broadcast %cst_39 : f32 to vector<16x128xf32>
    %73 = arith.select %70, %71, %72 : vector<16x128xi1>, vector<16x128xf32>
    %cst_40 = arith.constant dense<0.000000e+00> : vector<128xf32>
    %74 = vector.multi_reduction <add>, %73, %cst_40 [0] : vector<16x128xf32> to vector<128xf32>
    %75 = vector.shape_cast %74 : vector<128xf32> to vector<1x128xf32>
    %c0_41 = arith.constant 0 : index
    %c0_42 = arith.constant 0 : index
    %76 = vector.load %arg8[%c0_41, %c0_42] : memref<128x128xf32, #tpu.memory_space<vmem>>, vector<128x128xf32>
    %77 = vector.broadcast %48 : vector<1x128xf32> to vector<128x128xf32>
    %78 = arith.addf %76, %77 : vector<128x128xf32>
    %cst_43 = arith.constant 0.000000e+00 : f32
    %79 = vector.broadcast %cst_43 : f32 to vector<128x128xf32>
    %80 = arith.maximumf %78, %79 : vector<128x128xf32>
    %c0_44 = arith.constant 0 : index
    %c0_45 = arith.constant 0 : index
    %81 = vector.load %arg15[%c0_44, %c0_45] : memref<1x128xf32, #tpu.memory_space<vmem>>, vector<1x128xf32>
    %cst_46 = arith.constant dense<0.000000e+00> : vector<1x128xf32>
    %82 = tpu.matmul %81, %80, %cst_46 {dimension_numbers = #tpu.dot_dimension_numbers<[1], [1], [0], [0], [0, 0, 1, 0], [], []>} : vector<1x128xf32>, vector<128x128xf32>, vector<1x128xf32> -> vector<1x128xf32>
    %83 = tpu.iota {dimensions = array<i32: 1>} : vector<1x128xi32>
    %c16_i32 = arith.constant 16 : i32
    %84 = vector.broadcast %c16_i32 : i32 to vector<1x128xi32>
    %85 = arith.cmpi slt, %83, %84 : vector<1x128xi32>
    %cst_47 = arith.constant -1.000000e+30 : f32
    %86 = vector.broadcast %cst_47 : f32 to vector<1x128xf32>
    %87 = arith.select %85, %82, %86 : vector<1x128xi1>, vector<1x128xf32>
    %cst_48 = arith.constant dense<0xFF800000> : vector<1xf32>
    %88 = vector.multi_reduction <maximumf>, %87, %cst_48 [1] : vector<1x128xf32> to vector<1xf32>
    %89 = vector.shape_cast %88 : vector<1xf32> to vector<1x1xf32>
    %90 = vector.broadcast %89 : vector<1x1xf32> to vector<1x128xf32>
    %91 = arith.subf %87, %90 : vector<1x128xf32>
    %92 = math.exp %91 : vector<1x128xf32>
    %cst_49 = arith.constant dense<0.000000e+00> : vector<1xf32>
    %93 = vector.multi_reduction <add>, %92, %cst_49 [1] : vector<1x128xf32> to vector<1xf32>
    %94 = vector.shape_cast %93 : vector<1xf32> to vector<1x1xf32>
    %95 = vector.broadcast %94 : vector<1x1xf32> to vector<1x128xf32>
    %96 = arith.divf %92, %95 : vector<1x128xf32>
    %97 = arith.mulf %96, %75 : vector<1x128xf32>
    %cst_50 = arith.constant dense<0.000000e+00> : vector<1xf32>
    %98 = vector.multi_reduction <add>, %97, %cst_50 [1] : vector<1x128xf32> to vector<1xf32>
    %99 = vector.shape_cast %98 : vector<1xf32> to vector<1x1xf32>
    %cst_51 = arith.constant 1.000000e-30 : f32
    %100 = vector.broadcast %cst_51 : f32 to vector<1x1xf32>
    %101 = arith.maximumf %99, %100 : vector<1x1xf32>
    %102 = vector.broadcast %101 : vector<1x1xf32> to vector<1x128xf32>
    %103 = arith.divf %97, %102 : vector<1x128xf32>
    %104 = vector.shape_cast %103 : vector<1x128xf32> to vector<1x1x128xf32>
    %c0_52 = arith.constant 0 : index
    %c0_53 = arith.constant 0 : index
    %c0_54 = arith.constant 0 : index
    %105 = vector.load %arg21[%c0_52, %c0_53, %c0_54] : memref<1x1x128xf32, #tpu.memory_space<vmem>>, vector<1x1x128xf32>
    tpu.vector_store %arg21[%c0_52, %c0_53, %c0_54], %104 {strides = array<i32>} : memref<1x1x128xf32, #tpu.memory_space<vmem>>, vector<1x1x128xf32>,
    %c0_55 = arith.constant 0 : index
    %c0_56 = arith.constant 0 : index
    %106 = vector.load %arg7[%c0_55, %c0_56] : memref<128x128xf32, #tpu.memory_space<vmem>>, vector<128x128xf32>
    %cst_57 = arith.constant dense<0.000000e+00> : vector<1x128xf32>
    %107 = tpu.matmul %103, %106, %cst_57 {dimension_numbers = #tpu.dot_dimension_numbers<[1], [0], [0], [1], [0, 0, 1, 1], [], []>} : vector<1x128xf32>, vector<128x128xf32>, vector<1x128xf32> -> vector<1x128xf32>
    %c0_58 = arith.constant 0 : index
    %c0_59 = arith.constant 0 : index
    %108 = vector.load %arg16[%c0_58, %c0_59] : memref<128x128xf32, #tpu.memory_space<vmem>>, vector<128x128xf32>
    %cst_60 = arith.constant dense<0.000000e+00> : vector<1x128xf32>
    %109 = tpu.matmul %107, %108, %cst_60 {dimension_numbers = #tpu.dot_dimension_numbers<[1], [0], [0], [1], [0, 0, 1, 1], [], []>} : vector<1x128xf32>, vector<128x128xf32>, vector<1x128xf32> -> vector<1x128xf32>
    %110 = arith.addf %109, %49 : vector<1x128xf32>
    %c0_61 = arith.constant 0 : index
    %c0_62 = arith.constant 0 : index
    %111 = vector.load %arg17[%c0_61, %c0_62] : memref<1x128xf32, #tpu.memory_space<vmem>>, vector<1x128xf32>
    %112 = arith.addf %110, %111 : vector<1x128xf32>
    %113 = math.tanh %112 : vector<1x128xf32>
    %c0_63 = arith.constant 0 : index
    %c0_64 = arith.constant 0 : index
    %114 = vector.load %arg27[%c0_63, %c0_64] : memref<1x128xf32, #tpu.memory_space<vmem>>, vector<1x128xf32>
    tpu.vector_store %arg27[%c0_63, %c0_64], %113 {strides = array<i32>} : memref<1x128xf32, #tpu.memory_space<vmem>>, vector<1x128xf32>,
    %115 = vector.shape_cast %113 : vector<1x128xf32> to vector<1x1x128xf32>
    %c0_65 = arith.constant 0 : index
    %c0_66 = arith.constant 0 : index
    %c0_67 = arith.constant 0 : index
    %116 = vector.load %arg22[%c0_65, %c0_66, %c0_67] : memref<1x1x128xf32, #tpu.memory_space<vmem>>, vector<1x1x128xf32>
    tpu.vector_store %arg22[%c0_65, %c0_66, %c0_67], %115 {strides = array<i32>} : memref<1x1x128xf32, #tpu.memory_space<vmem>>, vector<1x1x128xf32>,
    %c0_68 = arith.constant 0 : index
    %c0_69 = arith.constant 0 : index
    %117 = vector.load %arg18[%c0_68, %c0_69] : memref<128x128xf32, #tpu.memory_space<vmem>>, vector<128x128xf32>
    %cst_70 = arith.constant dense<0.000000e+00> : vector<1x128xf32>
    %118 = tpu.matmul %113, %117, %cst_70 {dimension_numbers = #tpu.dot_dimension_numbers<[1], [0], [0], [1], [0, 0, 1, 1], [], []>} : vector<1x128xf32>, vector<128x128xf32>, vector<1x128xf32> -> vector<1x128xf32>
    %c0_71 = arith.constant 0 : index
    %c0_72 = arith.constant 0 : index
    %119 = vector.load %arg19[%c0_71, %c0_72] : memref<1x128xf32, #tpu.memory_space<vmem>>, vector<1x128xf32>
    %120 = arith.addf %118, %119 : vector<1x128xf32>
    %121 = tpu.iota {dimensions = array<i32: 1>} : vector<1x128xi32>
    %c64_i32 = arith.constant 64 : i32
    %122 = vector.broadcast %c64_i32 : i32 to vector<1x128xi32>
    %123 = arith.cmpi slt, %121, %122 : vector<1x128xi32>
    %cst_73 = arith.constant -1.000000e+30 : f32
    %124 = vector.broadcast %cst_73 : f32 to vector<1x128xf32>
    %125 = arith.select %123, %120, %124 : vector<1x128xi1>, vector<1x128xf32>
    %cst_74 = arith.constant dense<0xFF800000> : vector<1xf32>
    %126 = vector.multi_reduction <maximumf>, %125, %cst_74 [1] : vector<1x128xf32> to vector<1xf32>
    %127 = vector.shape_cast %126 : vector<1xf32> to vector<1x1xf32>
    %128 = vector.broadcast %127 : vector<1x1xf32> to vector<1x128xf32>
    %129 = arith.subf %125, %128 : vector<1x128xf32>
    %130 = math.exp %129 : vector<1x128xf32>
    %cst_75 = arith.constant dense<0.000000e+00> : vector<1xf32>
    %131 = vector.multi_reduction <add>, %130, %cst_75 [1] : vector<1x128xf32> to vector<1xf32>
    %132 = vector.shape_cast %131 : vector<1xf32> to vector<1x1xf32>
    %133 = math.log %132 : vector<1x1xf32>
    %134 = arith.addf %133, %127 : vector<1x1xf32>
    %135 = vector.broadcast %134 : vector<1x1xf32> to vector<1x128xf32>
    %136 = arith.subf %125, %135 : vector<1x128xf32>
    %137 = vector.shape_cast %136 : vector<1x128xf32> to vector<1x1x128xf32>
    %c0_76 = arith.constant 0 : index
    %c0_77 = arith.constant 0 : index
    %c0_78 = arith.constant 0 : index
    %138 = vector.load %arg20[%c0_76, %c0_77, %c0_78] : memref<1x1x128xf32, #tpu.memory_space<vmem>>, vector<1x1x128xf32>
    tpu.vector_store %arg20[%c0_76, %c0_77, %c0_78], %137 {strides = array<i32>} : memref<1x1x128xf32, #tpu.memory_space<vmem>>, vector<1x1x128xf32>,
    return
  }
  func.func @transform_0(%arg0: i32, %arg1: memref<6xi32, #tpu.memory_space<smem>>) -> (i32, i32) {
    %c0_i32 = arith.constant 0 : i32
    %c0_i32_0 = arith.constant 0 : i32
    %c0_i32_1 = arith.constant 0 : i32
    return %c0_i32, %c0_i32_0 : i32, i32
  }
  func.func @transform_1(%arg0: i32, %arg1: memref<6xi32, #tpu.memory_space<smem>>) -> (i32, i32, i32) {
    %0 = arith.index_cast %arg0 : i32 to index
    %1 = memref.load %arg1[%0] : memref<6xi32, #tpu.memory_space<smem>>
    %c0_i32 = arith.constant 0 : i32
    %c0_i32_0 = arith.constant 0 : i32
    %c0_i32_1 = arith.constant 0 : i32
    return %1, %c0_i32, %c0_i32_0 : i32, i32, i32
  }
  func.func @transform_2(%arg0: i32, %arg1: memref<6xi32, #tpu.memory_space<smem>>) -> (i32, i32) {
    %c0_i32 = arith.constant 0 : i32
    %c0_i32_0 = arith.constant 0 : i32
    %c0_i32_1 = arith.constant 0 : i32
    return %c0_i32, %c0_i32_0 : i32, i32
  }
  func.func @transform_3(%arg0: i32, %arg1: memref<6xi32, #tpu.memory_space<smem>>) -> (i32, i32) {
    %c0_i32 = arith.constant 0 : i32
    %c0_i32_0 = arith.constant 0 : i32
    %c0_i32_1 = arith.constant 0 : i32
    return %c0_i32, %c0_i32_0 : i32, i32
  }
  func.func @transform_4(%arg0: i32, %arg1: memref<6xi32, #tpu.memory_space<smem>>) -> (i32, i32) {
    %c0_i32 = arith.constant 0 : i32
    %c0_i32_0 = arith.constant 0 : i32
    %c0_i32_1 = arith.constant 0 : i32
    return %c0_i32, %c0_i32_0 : i32, i32
  }
  func.func @transform_5(%arg0: i32, %arg1: memref<6xi32, #tpu.memory_space<smem>>) -> (i32, i32) {
    %c0_i32 = arith.constant 0 : i32
    %c0_i32_0 = arith.constant 0 : i32
    %c0_i32_1 = arith.constant 0 : i32
    return %c0_i32, %c0_i32_0 : i32, i32
  }
  func.func @transform_6(%arg0: i32, %arg1: memref<6xi32, #tpu.memory_space<smem>>) -> (i32, i32) {
    %c0_i32 = arith.constant 0 : i32
    %c0_i32_0 = arith.constant 0 : i32
    %c0_i32_1 = arith.constant 0 : i32
    return %c0_i32, %c0_i32_0 : i32, i32
  }
  func.func @transform_7(%arg0: i32, %arg1: memref<6xi32, #tpu.memory_space<smem>>) -> (i32, i32) {
    %c0_i32 = arith.constant 0 : i32
    %c0_i32_0 = arith.constant 0 : i32
    %c0_i32_1 = arith.constant 0 : i32
    return %c0_i32, %c0_i32_0 : i32, i32
  }
  func.func @transform_8(%arg0: i32, %arg1: memref<6xi32, #tpu.memory_space<smem>>) -> (i32, i32) {
    %c0_i32 = arith.constant 0 : i32
    %c0_i32_0 = arith.constant 0 : i32
    %c0_i32_1 = arith.constant 0 : i32
    return %c0_i32, %c0_i32_0 : i32, i32
  }
  func.func @transform_9(%arg0: i32, %arg1: memref<6xi32, #tpu.memory_space<smem>>) -> (i32, i32) {
    %c0_i32 = arith.constant 0 : i32
    %c0_i32_0 = arith.constant 0 : i32
    %c0_i32_1 = arith.constant 0 : i32
    return %c0_i32, %c0_i32_0 : i32, i32
  }
  func.func @transform_10(%arg0: i32, %arg1: memref<6xi32, #tpu.memory_space<smem>>) -> (i32, i32) {
    %c0_i32 = arith.constant 0 : i32
    %c0_i32_0 = arith.constant 0 : i32
    %c0_i32_1 = arith.constant 0 : i32
    return %c0_i32, %c0_i32_0 : i32, i32
  }
  func.func @transform_11(%arg0: i32, %arg1: memref<6xi32, #tpu.memory_space<smem>>) -> (i32, i32) {
    %c0_i32 = arith.constant 0 : i32
    %c0_i32_0 = arith.constant 0 : i32
    %c0_i32_1 = arith.constant 0 : i32
    return %c0_i32, %c0_i32_0 : i32, i32
  }
  func.func @transform_12(%arg0: i32, %arg1: memref<6xi32, #tpu.memory_space<smem>>) -> (i32, i32) {
    %c0_i32 = arith.constant 0 : i32
    %c0_i32_0 = arith.constant 0 : i32
    %c0_i32_1 = arith.constant 0 : i32
    return %c0_i32, %c0_i32_0 : i32, i32
  }
  func.func @transform_13(%arg0: i32, %arg1: memref<6xi32, #tpu.memory_space<smem>>) -> (i32, i32) {
    %c0_i32 = arith.constant 0 : i32
    %c0_i32_0 = arith.constant 0 : i32
    %c0_i32_1 = arith.constant 0 : i32
    return %c0_i32, %c0_i32_0 : i32, i32
  }
  func.func @transform_14(%arg0: i32, %arg1: memref<6xi32, #tpu.memory_space<smem>>) -> (i32, i32) {
    %c0_i32 = arith.constant 0 : i32
    %c0_i32_0 = arith.constant 0 : i32
    %c0_i32_1 = arith.constant 0 : i32
    return %c0_i32, %c0_i32_0 : i32, i32
  }
  func.func @transform_15(%arg0: i32, %arg1: memref<6xi32, #tpu.memory_space<smem>>) -> (i32, i32) {
    %c0_i32 = arith.constant 0 : i32
    %c0_i32_0 = arith.constant 0 : i32
    %c0_i32_1 = arith.constant 0 : i32
    return %c0_i32, %c0_i32_0 : i32, i32
  }
  func.func @transform_16(%arg0: i32, %arg1: memref<6xi32, #tpu.memory_space<smem>>) -> (i32, i32) {
    %c0_i32 = arith.constant 0 : i32
    %c0_i32_0 = arith.constant 0 : i32
    %c0_i32_1 = arith.constant 0 : i32
    return %c0_i32, %c0_i32_0 : i32, i32
  }
  func.func @transform_17(%arg0: i32, %arg1: memref<6xi32, #tpu.memory_space<smem>>) -> (i32, i32) {
    %c0_i32 = arith.constant 0 : i32
    %c0_i32_0 = arith.constant 0 : i32
    %c0_i32_1 = arith.constant 0 : i32
    return %c0_i32, %c0_i32_0 : i32, i32
  }
  func.func @transform_18(%arg0: i32, %arg1: memref<6xi32, #tpu.memory_space<smem>>) -> (i32, i32, i32) {
    %c0_i32 = arith.constant 0 : i32
    %c0_i32_0 = arith.constant 0 : i32
    %c0_i32_1 = arith.constant 0 : i32
    return %arg0, %c0_i32, %c0_i32_0 : i32, i32, i32
  }
  func.func @transform_19(%arg0: i32, %arg1: memref<6xi32, #tpu.memory_space<smem>>) -> (i32, i32, i32) {
    %c0_i32 = arith.constant 0 : i32
    %c0_i32_0 = arith.constant 0 : i32
    %c0_i32_1 = arith.constant 0 : i32
    return %arg0, %c0_i32, %c0_i32_0 : i32, i32, i32
  }
  func.func @transform_20(%arg0: i32, %arg1: memref<6xi32, #tpu.memory_space<smem>>) -> (i32, i32, i32) {
    %c0_i32 = arith.constant 0 : i32
    %c0_i32_0 = arith.constant 0 : i32
    %c0_i32_1 = arith.constant 0 : i32
    return %arg0, %c0_i32, %c0_i32_0 : i32, i32, i32
  }
  func.func @transform_21(%arg0: i32, %arg1: memref<6xi32, #tpu.memory_space<smem>>) -> (i32, i32) {
    %c0_i32 = arith.constant 0 : i32
    %c0_i32_0 = arith.constant 0 : i32
    %c0_i32_1 = arith.constant 0 : i32
    return %c0_i32, %c0_i32_0 : i32, i32
  }
  func.func @transform_22(%arg0: i32, %arg1: memref<6xi32, #tpu.memory_space<smem>>) -> (i32, i32) {
    %c0_i32 = arith.constant 0 : i32
    %c0_i32_0 = arith.constant 0 : i32
    %c0_i32_1 = arith.constant 0 : i32
    return %c0_i32, %c0_i32_0 : i32, i32
  }
}

</mosaic_0001>

<llo_original>
// kernel: decode.1
$region0: #{decode.1}
  #allocation0 [shape = 'u32[]', space=smem, size = 0x4, offset = 0x4, fixed_abs, tag = 'smem constant byte address 0x4 - core index']
  #allocation1 [shape = 'u32[144,128]{1,0:T(1,128)}', space=vmem, size = 0x12000, scoped, tag = 'internal scratch']
  #allocation2 [shape = 'f32[1,128]{1,0:T(1,128)}', space=vmem, size = 0x200, scoped, tag = 'scratch operand']
  #allocation3 [shape = 'f32[1,128]{1,0:T(1,128)}', space=vmem, size = 0x200, scoped, tag = 'scratch operand']
  #allocation4 [shape = 'f32[1,128]{1,0:T(1,128)}', space=vmem, size = 0x200, scoped, tag = 'scratch operand']
  #allocation5 [shape = 's32[1]{0}', space=sflag, size = 0x4, scoped, tag = 'scoped memory for decode.1']
  #allocation6 [shape = 'u8[512]{0}', space=smem, size = 0x200, scoped, tag = 'prefetched SMEM operand 0']
  #allocation7 [shape = 'f32[1,1]{1,0:T(1,128)S(1)}', space=vmem, size = 0x200, scoped, tag = 'scoped memory for decode.1']
  %s0 = inlined_call_operand.vmem [shape: s32[6], index: 0, kind: input, shape index: {}]
  %s1 = inlined_call_operand.<no memory space> [shape: f32[1,1], index: 1, kind: input, shape index: {}]
  %s2 = inlined_call_operand.hbm [shape: f32[64,1,128], index: 2, kind: input, shape index: {}]
  %s3 = inlined_call_operand.vmem [shape: f32[1,128], index: 3, kind: input, shape index: {}]
  %s4 = inlined_call_operand.vmem [shape: f32[1,128], index: 4, kind: input, shape index: {}]
  %s5 = inlined_call_operand.vmem [shape: f32[1,128], index: 5, kind: input, shape index: {}]
  %s6 = inlined_call_operand.vmem [shape: f32[128,128], index: 6, kind: input, shape index: {}]
  %s7 = inlined_call_operand.vmem [shape: f32[128,128], index: 7, kind: input, shape index: {}]
  %s8 = inlined_call_operand.vmem [shape: f32[16,128], index: 8, kind: input, shape index: {}]
  %s9 = inlined_call_operand.hbm [shape: f32[384,512], index: 9, kind: input, shape index: {}]
  %s10 = inlined_call_operand.hbm [shape: f32[1,512], index: 10, kind: input, shape index: {}]
  %s11 = inlined_call_operand.vmem [shape: f32[128,384], index: 11, kind: input, shape index: {}]
  %s12 = inlined_call_operand.hbm [shape: f32[1,128], index: 12, kind: input, shape index: {}]
  %s13 = inlined_call_operand.hbm [shape: f32[1,128], index: 13, kind: input, shape index: {}]
  %s14 = inlined_call_operand.hbm [shape: f32[1,128], index: 14, kind: input, shape index: {}]
  %s15 = inlined_call_operand.vmem [shape: f32[128,128], index: 15, kind: input, shape index: {}]
  %s16 = inlined_call_operand.hbm [shape: f32[1,128], index: 16, kind: input, shape index: {}]
  %s17 = inlined_call_operand.hbm [shape: f32[128,128], index: 17, kind: input, shape index: {}]
  %s18 = inlined_call_operand.hbm [shape: f32[1,128], index: 18, kind: input, shape index: {}]
  %s19 = inlined_call_operand.vmem [shape: f32[6,1,128], index: 19, kind: output, shape index: {0}]
  %s20 = inlined_call_operand.vmem [shape: f32[6,1,128], index: 20, kind: output, shape index: {1}]
  %s21 = inlined_call_operand.vmem [shape: f32[6,1,128], index: 21, kind: output, shape index: {2}]
  %s22 = inlined_call_operand.vmem [shape: f32[1,128], index: 22, kind: output, shape index: {3}]
  %s23 = inlined_call_operand.vmem [shape: f32[1,128], index: 23, kind: output, shape index: {4}]
  %24 = xla_tuple %s19, %s20, %s21, %s22, %s23
  %s25 = sld [smem:[#allocation0]]
  $region177: #{decode.1} parent=0
    _
  %s27 = ssub.s32 1, %s25
  %s28 = scalar_select 0, %s27, %s25
  %s29 = sshll.u32 %s0, 4
  %s30 = int_to_ptr.vmem [resolvable:$true] %s29
  %32 = dma.vmem_to_smem %s30, 16, [#allocation6], [#allocation5]
  %v33 = vstv %s1
  %34 = vst [vmem:[#allocation7] sm:$0x1] %v33
  %35 = dma.done [#allocation5], 16
  %36 = sfence
  $region1: #{decode.1} parent=0
    #allocation8 [shape = 'u8[1024]{0}', space=vmem, size = 0x400, scoped, tag = 'input window, operand 2']
    #allocation9 [shape = 's32[2]{0}', space=sflag, size = 0x8, scoped, tag = 'scoped memory for decode.1']
    #allocation10 [shape = 'u8[786432]{0}', space=vmem, size = 0xc0000, scoped, tag = 'input window, operand 9, single buffered']
    #allocation11 [shape = 's32[1]{0}', space=sflag, size = 0x4, scoped, tag = 'scoped memory for decode.1']
    #allocation12 [shape = 'u8[2048]{0}', space=vmem, size = 0x800, scoped, tag = 'input window, operand 10, single buffered']
    #allocation13 [shape = 'u8[512]{0}', space=vmem, size = 0x400, scoped, tag = 'input window, operand 12, single buffered']
    #allocation14 [shape = 's32[1]{0}', space=sflag, size = 0x4, scoped, tag = 'scoped memory for decode.1']
    #allocation15 [shape = 'u8[512]{0}', space=vmem, size = 0x400, scoped, tag = 'input window, operand 13, single buffered']
    #allocation16 [shape = 'u8[512]{0}', space=vmem, size = 0x400, scoped, tag = 'input window, operand 14, single buffered']
    #allocation17 [shape = 's32[1]{0}', space=sflag, size = 0x4, scoped, tag = 'scoped memory for decode.1']
    #allocation18 [shape = 'u8[512]{0}', space=vmem, size = 0x400, scoped, tag = 'input window, operand 16, single buffered']
    #allocation19 [shape = 'u8[65536]{0}', space=vmem, size = 0x10000, scoped, tag = 'input window, operand 17, single buffered']
    #allocation20 [shape = 's32[1]{0}', space=sflag, size = 0x4, scoped, tag = 'scoped memory for decode.1']
    #allocation21 [shape = 'u8[512]{0}', space=vmem, size = 0x400, scoped, tag = 'input window, operand 18, single buffered']
    %37 = vsyncpa [#allocation9], 0
    %s38 = scalar_lea.sflag [#allocation9], 1
    %39 = vsyncpa %s38, 0
    %40 = vsyncpa [#allocation11], 0
    %41 = vsyncpa [#allocation14], 0
    %42 = vsyncpa [#allocation17], 0
    %43 = vsyncpa [#allocation20], 0
    loop: start=0, step=1, limit=8
    $region2: #{decode.1} parent=1 // loop_pre_header
      _
    $region3: #{decode.1} parent=1 // loop_header
      %s45 = sphi 0, %s49
      %p46 = scmp.ge.s32.totalorder %s45, 8
      %s53 = sphi 0, %s53
      %s55 = sphi 0, %s53
      %s56 = sphi 0, %s55
      %s70 = sphi 0, %s56
      %s78 = sphi 0, %s80
      %s81 = sphi 0, %s78
      %s82 = sphi 0, %s81
      %s98 = sphi 0, %s82
      %s102 = sphi 0, %s102
      %s104 = sphi 0, %s102
      %s105 = sphi 0, %s104
      %s119 = sphi 0, %s105
      %s123 = sphi 0, %s123
      %s125 = sphi 0, %s123
      %s126 = sphi 0, %s125
      %s140 = sphi 0, %s126
      %s144 = sphi 0, %s144
      %s146 = sphi 0, %s144
      %s147 = sphi 0, %s146
      %s161 = sphi 0, %s147
      %s165 = sphi 0, %s165
      %s167 = sphi 0, %s165
      %s168 = sphi 0, %s167
      %s182 = sphi 0, %s168
      %s186 = sphi 0, %s186
      %s188 = sphi 0, %s186
      %s189 = sphi 0, %s188
      %s203 = sphi 0, %s189
      %s207 = sphi 0, %s207
      %s209 = sphi 0, %s207
      %s210 = sphi 0, %s209
      %s224 = sphi 0, %s210
      %s228 = sphi 0, %s228
      %s230 = sphi 0, %s228
      %s231 = sphi 0, %s230
      %s245 = sphi 0, %s231
      %s249 = sphi 0, %s249
      %s251 = sphi 0, %s249
      %s252 = sphi 0, %s251
      %s266 = sphi 0, %s252
      %s270 = sphi 0, %s270
      %s272 = sphi 0, %s270
      %s273 = sphi 0, %s272
      %s287 = sphi 0, %s273
      %s291 = sphi 0, %s291
      %s293 = sphi 0, %s291
      %s294 = sphi 0, %s293
      %s308 = sphi 0, %s294
      %s312 = sphi 0, %s312
      %s314 = sphi 0, %s312
      %s315 = sphi 0, %s314
      %s329 = sphi 0, %s315
      %s333 = sphi 0, %s333
      %s335 = sphi 0, %s333
      %s336 = sphi 0, %s335
      %s350 = sphi 0, %s336
      %s354 = sphi 0, %s354
      %s356 = sphi 0, %s354
      %s357 = sphi 0, %s356
      %s371 = sphi 0, %s357
      %s375 = sphi 0, %s375
      %s377 = sphi 0, %s375
      %s378 = sphi 0, %s377
      %s392 = sphi 0, %s378
      %s396 = sphi 0, %s396
      %s398 = sphi 0, %s396
      %s399 = sphi 0, %s398
      %s413 = sphi 0, %s399
      %s417 = sphi 0, %s417
      %s419 = sphi 0, %s417
      %s420 = sphi 0, %s419
      %s434 = sphi 0, %s420
      %s440 = sphi 0, %s442
      %s443 = sphi 0, %s440
      %s444 = sphi 0, %s443
      %s460 = sphi 0, %s444
      %s466 = sphi 0, %s468
      %s469 = sphi 0, %s466
      %s470 = sphi 0, %s469
      %s486 = sphi 0, %s470
      %s492 = sphi 0, %s494
      %s495 = sphi 0, %s492
      %s496 = sphi 0, %s495
      %s512 = sphi 0, %s496
      %s516 = sphi 0, %s516
      %s518 = sphi 0, %s516
      %s519 = sphi 0, %s518
      %s533 = sphi 0, %s519
      %s537 = sphi 0, %s537
      %s539 = sphi 0, %s537
      %s540 = sphi 0, %s539
      %s554 = sphi 0, %s540
    $region4: #{decode.1} parent=1 // loop_header_branch
      %48 = sbr.rel (%p46) target = $region8
    $region5: #{decode.1} parent=1 // loop_body
      %s50 = ssub.s32 %s45, 1
      %s51 = ssub.s32 %s45, 2
      %s52 = sadd.s32 %s45, 1
      %s54 = sadd.s32 %s53, 1
      %p57 = scmp.eq.s32.totalorder %s45, 5
      %p58 = scmp.ne.s32.totalorder %s53, %s55
      %p59 = scmp.eq.s32.totalorder %s45, 0
      %p60 = por %p58, %p59
      %p61 = scmp.ne.s32.totalorder %s53, %s55
      %p62 = scmp.eq.s32.totalorder %s50, 5
      %p63 = por %p61, %p62
      %p64 = scmp.ne.s32.totalorder %s55, %s56
      %p65 = scmp.eq.s32.totalorder %s50, 0
      %p66 = por %p64, %p65
      %p67 = scmp.ne.s32.totalorder %s55, %s56
      %p68 = scmp.eq.s32.totalorder %s51, 5
      %p69 = por %p67, %p68
      %p71 = scmp.ne.s32.totalorder %s56, %s70
      %p72 = scmp.eq.s32.totalorder %s51, 0
      %p73 = por %p71, %p72
      %s74 = sld [smem:[#allocation6 + %s45]]
      %s75 = sld [smem:[#allocation6 + %s52]]
      %s76 = ssub.s32 %s74, %s75
      %p77 = scmp.eq.s32.totalorder %s76, 0
      %s79 = sadd.s32 %s78, 1
      %s80 = scalar_select %p77, %s78, %s79
      %p83 = pneg %p77
      %p84 = scmp.eq.s32.totalorder %s45, 5
      %p85 = por %p83, %p84
      %p86 = scmp.ne.s32.totalorder %s78, %s81
      %p87 = scmp.eq.s32.totalorder %s45, 0
      %p88 = por %p86, %p87
      %p89 = scmp.ne.s32.totalorder %s78, %s81
      %p90 = scmp.eq.s32.totalorder %s50, 5
      %p91 = por %p89, %p90
      %p92 = scmp.ne.s32.totalorder %s81, %s82
      %p93 = scmp.eq.s32.totalorder %s50, 0
      %p94 = por %p92, %p93
      %p95 = scmp.ne.s32.totalorder %s81, %s82
      %p96 = scmp.eq.s32.totalorder %s51, 5
      %p97 = por %p95, %p96
      %p99 = scmp.ne.s32.totalorder %s82, %s98
      %p100 = scmp.eq.s32.totalorder %s51, 0
      %p101 = por %p99, %p100
      %s103 = sadd.s32 %s102, 1
      %p106 = scmp.eq.s32.totalorder %s45, 5
      %p107 = scmp.ne.s32.totalorder %s102, %s104
      %p108 = scmp.eq.s32.totalorder %s45, 0
      %p109 = por %p107, %p108
      %p110 = scmp.ne.s32.totalorder %s102, %s104
      %p111 = scmp.eq.s32.totalorder %s50, 5
      %p112 = por %p110, %p111
      %p113 = scmp.ne.s32.totalorder %s104, %s105
      %p114 = scmp.eq.s32.totalorder %s50, 0
      %p115 = por %p113, %p114
      %p116 = scmp.ne.s32.totalorder %s104, %s105
      %p117 = scmp.eq.s32.totalorder %s51, 5
      %p118 = por %p116, %p117
      %p120 = scmp.ne.s32.totalorder %s105, %s119
      %p121 = scmp.eq.s32.totalorder %s51, 0
      %p122 = por %p120, %p121
      %s124 = sadd.s32 %s123, 1
      %p127 = scmp.eq.s32.totalorder %s45, 5
      %p128 = scmp.ne.s32.totalorder %s123, %s125
      %p129 = scmp.eq.s32.totalorder %s45, 0
      %p130 = por %p128, %p129
      %p131 = scmp.ne.s32.totalorder %s123, %s125
      %p132 = scmp.eq.s32.totalorder %s50, 5
      %p133 = por %p131, %p132
      %p134 = scmp.ne.s32.totalorder %s125, %s126
      %p135 = scmp.eq.s32.totalorder %s50, 0
      %p136 = por %p134, %p135
      %p137 = scmp.ne.s32.totalorder %s125, %s126
      %p138 = scmp.eq.s32.totalorder %s51, 5
      %p139 = por %p137, %p138
      %p141 = scmp.ne.s32.totalorder %s126, %s140
      %p142 = scmp.eq.s32.totalorder %s51, 0
      %p143 = por %p141, %p142
      %s145 = sadd.s32 %s144, 1
      %p148 = scmp.eq.s32.totalorder %s45, 5
      %p149 = scmp.ne.s32.totalorder %s144, %s146
      %p150 = scmp.eq.s32.totalorder %s45, 0
      %p151 = por %p149, %p150
      %p152 = scmp.ne.s32.totalorder %s144, %s146
      %p153 = scmp.eq.s32.totalorder %s50, 5
      %p154 = por %p152, %p153
      %p155 = scmp.ne.s32.totalorder %s146, %s147
      %p156 = scmp.eq.s32.totalorder %s50, 0
      %p157 = por %p155, %p156
      %p158 = scmp.ne.s32.totalorder %s146, %s147
      %p159 = scmp.eq.s32.totalorder %s51, 5
      %p160 = por %p158, %p159
      %p162 = scmp.ne.s32.totalorder %s147, %s161
      %p163 = scmp.eq.s32.totalorder %s51, 0
      %p164 = por %p162, %p163
      %s166 = sadd.s32 %s165, 1
      %p169 = scmp.eq.s32.totalorder %s45, 5
      %p170 = scmp.ne.s32.totalorder %s165, %s167
      %p171 = scmp.eq.s32.totalorder %s45, 0
      %p172 = por %p170, %p171
      %p173 = scmp.ne.s32.totalorder %s165, %s167
      %p174 = scmp.eq.s32.totalorder %s50, 5
      %p175 = por %p173, %p174
      %p176 = scmp.ne.s32.totalorder %s167, %s168
      %p177 = scmp.eq.s32.totalorder %s50, 0
      %p178 = por %p176, %p177
      %p179 = scmp.ne.s32.totalorder %s167, %s168
      %p180 = scmp.eq.s32.totalorder %s51, 5
      %p181 = por %p179, %p180
      %p183 = scmp.ne.s32.totalorder %s168, %s182
      %p184 = scmp.eq.s32.totalorder %s51, 0
      %p185 = por %p183, %p184
      %s187 = sadd.s32 %s186, 1
      %p190 = scmp.eq.s32.totalorder %s45, 5
      %p191 = scmp.ne.s32.totalorder %s186, %s188
      %p192 = scmp.eq.s32.totalorder %s45, 0
      %p193 = por %p191, %p192
      %p194 = scmp.ne.s32.totalorder %s186, %s188
      %p195 = scmp.eq.s32.totalorder %s50, 5
      %p196 = por %p194, %p195
      %p197 = scmp.ne.s32.totalorder %s188, %s189
      %p198 = scmp.eq.s32.totalorder %s50, 0
      %p199 = por %p197, %p198
      %p200 = scmp.ne.s32.totalorder %s188, %s189
      %p201 = scmp.eq.s32.totalorder %s51, 5
      %p202 = por %p200, %p201
      %p204 = scmp.ne.s32.totalorder %s189, %s203
      %p205 = scmp.eq.s32.totalorder %s51, 0
      %p206 = por %p204, %p205
      %s208 = sadd.s32 %s207, 1
      %p211 = scmp.eq.s32.totalorder %s45, 5
      %p212 = scmp.ne.s32.totalorder %s207, %s209
      %p213 = scmp.eq.s32.totalorder %s45, 0
      %p214 = por %p212, %p213
      %p215 = scmp.ne.s32.totalorder %s207, %s209
      %p216 = scmp.eq.s32.totalorder %s50, 5
      %p217 = por %p215, %p216
      %p218 = scmp.ne.s32.totalorder %s209, %s210
      %p219 = scmp.eq.s32.totalorder %s50, 0
      %p220 = por %p218, %p219
      %p221 = scmp.ne.s32.totalorder %s209, %s210
      %p222 = scmp.eq.s32.totalorder %s51, 5
      %p223 = por %p221, %p222
      %p225 = scmp.ne.s32.totalorder %s210, %s224
      %p226 = scmp.eq.s32.totalorder %s51, 0
      %p227 = por %p225, %p226
      %s229 = sadd.s32 %s228, 1
      %p232 = scmp.eq.s32.totalorder %s45, 5
      %p233 = scmp.ne.s32.totalorder %s228, %s230
      %p234 = scmp.eq.s32.totalorder %s45, 0
      %p235 = por %p233, %p234
      %p236 = scmp.ne.s32.totalorder %s228, %s230
      %p237 = scmp.eq.s32.totalorder %s50, 5
      %p238 = por %p236, %p237
      %p239 = scmp.ne.s32.totalorder %s230, %s231
      %p240 = scmp.eq.s32.totalorder %s50, 0
      %p241 = por %p239, %p240
      %p242 = scmp.ne.s32.totalorder %s230, %s231
      %p243 = scmp.eq.s32.totalorder %s51, 5
      %p244 = por %p242, %p243
      %p246 = scmp.ne.s32.totalorder %s231, %s245
      %p247 = scmp.eq.s32.totalorder %s51, 0
      %p248 = por %p246, %p247
      %s250 = sadd.s32 %s249, 1
      %p253 = scmp.eq.s32.totalorder %s45, 5
      %p254 = scmp.ne.s32.totalorder %s249, %s251
      %p255 = scmp.eq.s32.totalorder %s45, 0
      %p256 = por %p254, %p255
      %p257 = scmp.ne.s32.totalorder %s249, %s251
      %p258 = scmp.eq.s32.totalorder %s50, 5
      %p259 = por %p257, %p258
      %p260 = scmp.ne.s32.totalorder %s251, %s252
      %p261 = scmp.eq.s32.totalorder %s50, 0
      %p262 = por %p260, %p261
      %p263 = scmp.ne.s32.totalorder %s251, %s252
      %p264 = scmp.eq.s32.totalorder %s51, 5
      %p265 = por %p263, %p264
      %p267 = scmp.ne.s32.totalorder %s252, %s266
      %p268 = scmp.eq.s32.totalorder %s51, 0
      %p269 = por %p267, %p268
      %s271 = sadd.s32 %s270, 1
      %p274 = scmp.eq.s32.totalorder %s45, 5
      %p275 = scmp.ne.s32.totalorder %s270, %s272
      %p276 = scmp.eq.s32.totalorder %s45, 0
      %p277 = por %p275, %p276
      %p278 = scmp.ne.s32.totalorder %s270, %s272
      %p279 = scmp.eq.s32.totalorder %s50, 5
      %p280 = por %p278, %p279
      %p281 = scmp.ne.s32.totalorder %s272, %s273
      %p282 = scmp.eq.s32.totalorder %s50, 0
      %p283 = por %p281, %p282
      %p284 = scmp.ne.s32.totalorder %s272, %s273
      %p285 = scmp.eq.s32.totalorder %s51, 5
      %p286 = por %p284, %p285
      %p288 = scmp.ne.s32.totalorder %s273, %s287
      %p289 = scmp.eq.s32.totalorder %s51, 0
      %p290 = por %p288, %p289
      %s292 = sadd.s32 %s291, 1
      %p295 = scmp.eq.s32.totalorder %s45, 5
      %p296 = scmp.ne.s32.totalorder %s291, %s293
      %p297 = scmp.eq.s32.totalorder %s45, 0
      %p298 = por %p296, %p297
      %p299 = scmp.ne.s32.totalorder %s291, %s293
      %p300 = scmp.eq.s32.totalorder %s50, 5
      %p301 = por %p299, %p300
      %p302 = scmp.ne.s32.totalorder %s293, %s294
      %p303 = scmp.eq.s32.totalorder %s50, 0
      %p304 = por %p302, %p303
      %p305 = scmp.ne.s32.totalorder %s293, %s294
      %p306 = scmp.eq.s32.totalorder %s51, 5
      %p307 = por %p305, %p306
      %p309 = scmp.ne.s32.totalorder %s294, %s308
      %p310 = scmp.eq.s32.totalorder %s51, 0
      %p311 = por %p309, %p310
      %s313 = sadd.s32 %s312, 1
      %p316 = scmp.eq.s32.totalorder %s45, 5
      %p317 = scmp.ne.s32.totalorder %s312, %s314
      %p318 = scmp.eq.s32.totalorder %s45, 0
      %p319 = por %p317, %p318
      %p320 = scmp.ne.s32.totalorder %s312, %s314
      %p321 = scmp.eq.s32.totalorder %s50, 5
      %p322 = por %p320, %p321
      %p323 = scmp.ne.s32.totalorder %s314, %s315
      %p324 = scmp.eq.s32.totalorder %s50, 0
      %p325 = por %p323, %p324
      %p326 = scmp.ne.s32.totalorder %s314, %s315
      %p327 = scmp.eq.s32.totalorder %s51, 5
      %p328 = por %p326, %p327
      %p330 = scmp.ne.s32.totalorder %s315, %s329
      %p331 = scmp.eq.s32.totalorder %s51, 0
      %p332 = por %p330, %p331
      %s334 = sadd.s32 %s333, 1
      %p337 = scmp.eq.s32.totalorder %s45, 5
      %p338 = scmp.ne.s32.totalorder %s333, %s335
      %p339 = scmp.eq.s32.totalorder %s45, 0
      %p340 = por %p338, %p339
      %p341 = scmp.ne.s32.totalorder %s333, %s335
      %p342 = scmp.eq.s32.totalorder %s50, 5
      %p343 = por %p341, %p342
      %p344 = scmp.ne.s32.totalorder %s335, %s336
      %p345 = scmp.eq.s32.totalorder %s50, 0
      %p346 = por %p344, %p345
      %p347 = scmp.ne.s32.totalorder %s335, %s336
      %p348 = scmp.eq.s32.totalorder %s51, 5
      %p349 = por %p347, %p348
      %p351 = scmp.ne.s32.totalorder %s336, %s350
      %p352 = scmp.eq.s32.totalorder %s51, 0
      %p353 = por %p351, %p352
      %s355 = sadd.s32 %s354, 1
      %p358 = scmp.eq.s32.totalorder %s45, 5
      %p359 = scmp.ne.s32.totalorder %s354, %s356
      %p360 = scmp.eq.s32.totalorder %s45, 0
      %p361 = por %p359, %p360
      %p362 = scmp.ne.s32.totalorder %s354, %s356
      %p363 = scmp.eq.s32.totalorder %s50, 5
      %p364 = por %p362, %p363
      %p365 = scmp.ne.s32.totalorder %s356, %s357
      %p366 = scmp.eq.s32.totalorder %s50, 0
      %p367 = por %p365, %p366
      %p368 = scmp.ne.s32.totalorder %s356, %s357
      %p369 = scmp.eq.s32.totalorder %s51, 5
      %p370 = por %p368, %p369
      %p372 = scmp.ne.s32.totalorder %s357, %s371
      %p373 = scmp.eq.s32.totalorder %s51, 0
      %p374 = por %p372, %p373
      %s376 = sadd.s32 %s375, 1
      %p379 = scmp.eq.s32.totalorder %s45, 5
      %p380 = scmp.ne.s32.totalorder %s375, %s377
      %p381 = scmp.eq.s32.totalorder %s45, 0
      %p382 = por %p380, %p381
      %p383 = scmp.ne.s32.totalorder %s375, %s377
      %p384 = scmp.eq.s32.totalorder %s50, 5
      %p385 = por %p383, %p384
      %p386 = scmp.ne.s32.totalorder %s377, %s378
      %p387 = scmp.eq.s32.totalorder %s50, 0
      %p388 = por %p386, %p387
      %p389 = scmp.ne.s32.totalorder %s377, %s378
      %p390 = scmp.eq.s32.totalorder %s51, 5
      %p391 = por %p389, %p390
      %p393 = scmp.ne.s32.totalorder %s378, %s392
      %p394 = scmp.eq.s32.totalorder %s51, 0
      %p395 = por %p393, %p394
      %s397 = sadd.s32 %s396, 1
      %p400 = scmp.eq.s32.totalorder %s45, 5
      %p401 = scmp.ne.s32.totalorder %s396, %s398
      %p402 = scmp.eq.s32.totalorder %s45, 0
      %p403 = por %p401, %p402
      %p404 = scmp.ne.s32.totalorder %s396, %s398
      %p405 = scmp.eq.s32.totalorder %s50, 5
      %p406 = por %p404, %p405
      %p407 = scmp.ne.s32.totalorder %s398, %s399
      %p408 = scmp.eq.s32.totalorder %s50, 0
      %p409 = por %p407, %p408
      %p410 = scmp.ne.s32.totalorder %s398, %s399
      %p411 = scmp.eq.s32.totalorder %s51, 5
      %p412 = por %p410, %p411
      %p414 = scmp.ne.s32.totalorder %s399, %s413
      %p415 = scmp.eq.s32.totalorder %s51, 0
      %p416 = por %p414, %p415
      %s418 = sadd.s32 %s417, 1
      %p421 = scmp.eq.s32.totalorder %s45, 5
      %p422 = scmp.ne.s32.totalorder %s417, %s419
      %p423 = scmp.eq.s32.totalorder %s45, 0
      %p424 = por %p422, %p423
      %p425 = scmp.ne.s32.totalorder %s417, %s419
      %p426 = scmp.eq.s32.totalorder %s50, 5
      %p427 = por %p425, %p426
      %p428 = scmp.ne.s32.totalorder %s419, %s420
      %p429 = scmp.eq.s32.totalorder %s50, 0
      %p430 = por %p428, %p429
      %p431 = scmp.ne.s32.totalorder %s419, %s420
      %p432 = scmp.eq.s32.totalorder %s51, 5
      %p433 = por %p431, %p432
      %p435 = scmp.ne.s32.totalorder %s420, %s434
      %p436 = scmp.eq.s32.totalorder %s51, 0
      %p437 = por %p435, %p436
      %s438 = ssub.s32 %s45, %s52
      %p439 = scmp.eq.s32.totalorder %s438, 0
      %s441 = sadd.s32 %s440, 1
      %s442 = scalar_select %p439, %s440, %s441
      %p445 = pneg %p439
      %p446 = scmp.eq.s32.totalorder %s45, 5
      %p447 = por %p445, %p446
      %p448 = scmp.ne.s32.totalorder %s440, %s443
      %p449 = scmp.eq.s32.totalorder %s45, 0
      %p450 = por %p448, %p449
      %p451 = scmp.ne.s32.totalorder %s440, %s443
      %p452 = scmp.eq.s32.totalorder %s50, 5
      %p453 = por %p451, %p452
      %p454 = scmp.ne.s32.totalorder %s443, %s444
      %p455 = scmp.eq.s32.totalorder %s50, 0
      %p456 = por %p454, %p455
      %p457 = scmp.ne.s32.totalorder %s443, %s444
      %p458 = scmp.eq.s32.totalorder %s51, 5
      %p459 = por %p457, %p458
      %p461 = scmp.ne.s32.totalorder %s444, %s460
      %p462 = scmp.eq.s32.totalorder %s51, 0
      %p463 = por %p461, %p462
      %s464 = ssub.s32 %s45, %s52
      %p465 = scmp.eq.s32.totalorder %s464, 0
      %s467 = sadd.s32 %s466, 1
      %s468 = scalar_select %p465, %s466, %s467
      %p471 = pneg %p465
      %p472 = scmp.eq.s32.totalorder %s45, 5
      %p473 = por %p471, %p472
      %p474 = scmp.ne.s32.totalorder %s466, %s469
      %p475 = scmp.eq.s32.totalorder %s45, 0
      %p476 = por %p474, %p475
      %p477 = scmp.ne.s32.totalorder %s466, %s469
      %p478 = scmp.eq.s32.totalorder %s50, 5
      %p479 = por %p477, %p478
      %p480 = scmp.ne.s32.totalorder %s469, %s470
      %p481 = scmp.eq.s32.totalorder %s50, 0
      %p482 = por %p480, %p481
      %p483 = scmp.ne.s32.totalorder %s469, %s470
      %p484 = scmp.eq.s32.totalorder %s51, 5
      %p485 = por %p483, %p484
      %p487 = scmp.ne.s32.totalorder %s470, %s486
      %p488 = scmp.eq.s32.totalorder %s51, 0
      %p489 = por %p487, %p488
      %s490 = ssub.s32 %s45, %s52
      %p491 = scmp.eq.s32.totalorder %s490, 0
      %s493 = sadd.s32 %s492, 1
      %s494 = scalar_select %p491, %s492, %s493
      %p497 = pneg %p491
      %p498 = scmp.eq.s32.totalorder %s45, 5
      %p499 = por %p497, %p498
      %p500 = scmp.ne.s32.totalorder %s492, %s495
      %p501 = scmp.eq.s32.totalorder %s45, 0
      %p502 = por %p500, %p501
      %p503 = scmp.ne.s32.totalorder %s492, %s495
      %p504 = scmp.eq.s32.totalorder %s50, 5
      %p505 = por %p503, %p504
      %p506 = scmp.ne.s32.totalorder %s495, %s496
      %p507 = scmp.eq.s32.totalorder %s50, 0
      %p508 = por %p506, %p507
      %p509 = scmp.ne.s32.totalorder %s495, %s496
      %p510 = scmp.eq.s32.totalorder %s51, 5
      %p511 = por %p509, %p510
      %p513 = scmp.ne.s32.totalorder %s496, %s512
      %p514 = scmp.eq.s32.totalorder %s51, 0
      %p515 = por %p513, %p514
      %s517 = sadd.s32 %s516, 1
      %p520 = scmp.eq.s32.totalorder %s45, 5
      %p521 = scmp.ne.s32.totalorder %s516, %s518
      %p522 = scmp.eq.s32.totalorder %s45, 0
      %p523 = por %p521, %p522
      %p524 = scmp.ne.s32.totalorder %s516, %s518
      %p525 = scmp.eq.s32.totalorder %s50, 5
      %p526 = por %p524, %p525
      %p527 = scmp.ne.s32.totalorder %s518, %s519
      %p528 = scmp.eq.s32.totalorder %s50, 0
      %p529 = por %p527, %p528
      %p530 = scmp.ne.s32.totalorder %s518, %s519
      %p531 = scmp.eq.s32.totalorder %s51, 5
      %p532 = por %p530, %p531
      %p534 = scmp.ne.s32.totalorder %s519, %s533
      %p535 = scmp.eq.s32.totalorder %s51, 0
      %p536 = por %p534, %p535
      %s538 = sadd.s32 %s537, 1
      %p541 = scmp.eq.s32.totalorder %s45, 5
      %p542 = scmp.ne.s32.totalorder %s537, %s539
      %p543 = scmp.eq.s32.totalorder %s45, 0
      %p544 = por %p542, %p543
      %p545 = scmp.ne.s32.totalorder %s537, %s539
      %p546 = scmp.eq.s32.totalorder %s50, 5
      %p547 = por %p545, %p546
      %p548 = scmp.ne.s32.totalorder %s539, %s540
      %p549 = scmp.eq.s32.totalorder %s50, 0
      %p550 = por %p548, %p549
      %p551 = scmp.ne.s32.totalorder %s539, %s540
      %p552 = scmp.eq.s32.totalorder %s51, 5
      %p553 = por %p551, %p552
      %p555 = scmp.ne.s32.totalorder %s540, %s554
      %p556 = scmp.eq.s32.totalorder %s51, 0
      %p557 = por %p555, %p556
      %p558 = scmp.le.s32.totalorder 1, %s45
      %p559 = scmp.lt.s32.totalorder %s45, 7
      %p560 = pnand %p558, %p559
      %p561 = pneg %p560
      // Predicated region
      $region9: #{decode.1} parent=5 // pred_check
        _
      $region10: #{decode.1} parent=5 // pred_check_branch
        %563 = sbr.rel (%p560) target = $region12
      $region11: #{decode.1} parent=5 // pred_region
        %s564 = ssub.s32 %s45, 1
        // Predicated region
        $region13: #{decode.1} parent=11 // pred_check
          %p565 = pneg %p66
        $region14: #{decode.1} parent=11 // pred_check_branch
          %567 = sbr.rel (%p565) target = $region16
        $region15: #{decode.1} parent=11 // pred_region
          _
        $region16: #{decode.1} parent=11 // pred_fallthru
          _
        // Predicated region
        $region17: #{decode.1} parent=11 // pred_check
          %p568 = pneg %p115
        $region18: #{decode.1} parent=11 // pred_check_branch
          %570 = sbr.rel (%p568) target = $region20
        $region19: #{decode.1} parent=11 // pred_region
          _
        $region20: #{decode.1} parent=11 // pred_fallthru
          _
        // Predicated region
        $region21: #{decode.1} parent=11 // pred_check
          %p571 = pneg %p136
        $region22: #{decode.1} parent=11 // pred_check_branch
          %573 = sbr.rel (%p571) target = $region24
        $region23: #{decode.1} parent=11 // pred_region
          _
        $region24: #{decode.1} parent=11 // pred_fallthru
          _
        // Predicated region
        $region25: #{decode.1} parent=11 // pred_check
          %p574 = pneg %p157
        $region26: #{decode.1} parent=11 // pred_check_branch
          %576 = sbr.rel (%p574) target = $region28
        $region27: #{decode.1} parent=11 // pred_region
          _
        $region28: #{decode.1} parent=11 // pred_fallthru
          _
        // Predicated region
        $region29: #{decode.1} parent=11 // pred_check
          %p577 = pneg %p178
        $region30: #{decode.1} parent=11 // pred_check_branch
          %579 = sbr.rel (%p577) target = $region32
        $region31: #{decode.1} parent=11 // pred_region
          _
        $region32: #{decode.1} parent=11 // pred_fallthru
          _
        // Predicated region
        $region33: #{decode.1} parent=11 // pred_check
          %p580 = pneg %p199
        $region34: #{decode.1} parent=11 // pred_check_branch
          %582 = sbr.rel (%p580) target = $region36
        $region35: #{decode.1} parent=11 // pred_region
          _
        $region36: #{decode.1} parent=11 // pred_fallthru
          _
        // Predicated region
        $region37: #{decode.1} parent=11 // pred_check
          %p583 = pneg %p220
        $region38: #{decode.1} parent=11 // pred_check_branch
          %585 = sbr.rel (%p583) target = $region40
        $region39: #{decode.1} parent=11 // pred_region
          _
        $region40: #{decode.1} parent=11 // pred_fallthru
          _
        // Predicated region
        $region41: #{decode.1} parent=11 // pred_check
          %p586 = pneg %p241
        $region42: #{decode.1} parent=11 // pred_check_branch
          %588 = sbr.rel (%p586) target = $region44
        $region43: #{decode.1} parent=11 // pred_region
          %s590 = ssub.s32 24576, 24576
          %591 = vsyncadd [#allocation11], %s590
          %s592 = sshll.u32 [#allocation10], 4
          %s593 = int_to_ptr.vmem [resolvable:$true] %s592
          %598 = dma.hbm_to_vmem [thread:$0]  %s9, 24576, %s593, [#allocation11], 512, 512, 32
        $region44: #{decode.1} parent=11 // pred_fallthru
          _
        // Predicated region
        $region45: #{decode.1} parent=11 // pred_check
          %p599 = pneg %p262
        $region46: #{decode.1} parent=11 // pred_check_branch
          %601 = sbr.rel (%p599) target = $region48
        $region47: #{decode.1} parent=11 // pred_region
          %s603 = ssub.s32 64, 64
          %604 = vsyncadd [#allocation11], %s603
          %s606 = sshll.u32 [#allocation12], 4
          %s607 = int_to_ptr.vmem [resolvable:$true] %s606
          %609 = dma.hbm_to_vmem [thread:$0]  %s10, 64, %s607, [#allocation11]
        $region48: #{decode.1} parent=11 // pred_fallthru
          _
        // Predicated region
        $region49: #{decode.1} parent=11 // pred_check
          %p610 = pneg %p283
        $region50: #{decode.1} parent=11 // pred_check_branch
          %612 = sbr.rel (%p610) target = $region52
        $region51: #{decode.1} parent=11 // pred_region
          _
        $region52: #{decode.1} parent=11 // pred_fallthru
          _
        // Predicated region
        $region53: #{decode.1} parent=11 // pred_check
          %p613 = pneg %p304
        $region54: #{decode.1} parent=11 // pred_check_branch
          %615 = sbr.rel (%p613) target = $region56
        $region55: #{decode.1} parent=11 // pred_region
          %s617 = ssub.s32 16, 16
          %618 = vsyncadd [#allocation14], %s617
          %s620 = sshll.u32 [#allocation13], 4
          %s621 = int_to_ptr.vmem [resolvable:$true] %s620
          %623 = dma.hbm_to_vmem [thread:$0]  %s12, 16, %s621, [#allocation14]
        $region56: #{decode.1} parent=11 // pred_fallthru
          _
        // Predicated region
        $region57: #{decode.1} parent=11 // pred_check
          %p624 = pneg %p325
        $region58: #{decode.1} parent=11 // pred_check_branch
          %626 = sbr.rel (%p624) target = $region60
        $region59: #{decode.1} parent=11 // pred_region
          %s628 = ssub.s32 16, 16
          %629 = vsyncadd [#allocation14], %s628
          %s631 = sshll.u32 [#allocation15], 4
          %s632 = int_to_ptr.vmem [resolvable:$true] %s631
          %634 = dma.hbm_to_vmem [thread:$0]  %s13, 16, %s632, [#allocation14]
        $region60: #{decode.1} parent=11 // pred_fallthru
          _
        // Predicated region
        $region61: #{decode.1} parent=11 // pred_check
          %p635 = pneg %p346
        $region62: #{decode.1} parent=11 // pred_check_branch
          %637 = sbr.rel (%p635) target = $region64
        $region63: #{decode.1} parent=11 // pred_region
          %s639 = ssub.s32 16, 16
          %640 = vsyncadd [#allocation17], %s639
          %s642 = sshll.u32 [#allocation16], 4
          %s643 = int_to_ptr.vmem [resolvable:$true] %s642
          %645 = dma.hbm_to_vmem [thread:$0]  %s14, 16, %s643, [#allocation17]
        $region64: #{decode.1} parent=11 // pred_fallthru
          _
        // Predicated region
        $region65: #{decode.1} parent=11 // pred_check
          %p646 = pneg %p367
        $region66: #{decode.1} parent=11 // pred_check_branch
          %648 = sbr.rel (%p646) target = $region68
        $region67: #{decode.1} parent=11 // pred_region
          _
        $region68: #{decode.1} parent=11 // pred_fallthru
          _
        // Predicated region
        $region69: #{decode.1} parent=11 // pred_check
          %p649 = pneg %p388
        $region70: #{decode.1} parent=11 // pred_check_branch
          %651 = sbr.rel (%p649) target = $region72
        $region71: #{decode.1} parent=11 // pred_region
          %s653 = ssub.s32 16, 16
          %654 = vsyncadd [#allocation17], %s653
          %s656 = sshll.u32 [#allocation18], 4
          %s657 = int_to_ptr.vmem [resolvable:$true] %s656
          %659 = dma.hbm_to_vmem [thread:$0]  %s16, 16, %s657, [#allocation17]
        $region72: #{decode.1} parent=11 // pred_fallthru
          _
        // Predicated region
        $region73: #{decode.1} parent=11 // pred_check
          %p660 = pneg %p409
        $region74: #{decode.1} parent=11 // pred_check_branch
          %662 = sbr.rel (%p660) target = $region76
        $region75: #{decode.1} parent=11 // pred_region
          %s664 = ssub.s32 2048, 2048
          %665 = vsyncadd [#allocation20], %s664
          %s666 = sshll.u32 [#allocation19], 4
          %s667 = int_to_ptr.vmem [resolvable:$true] %s666
          %672 = dma.hbm_to_vmem [thread:$0]  %s17, 2048, %s667, [#allocation20], 128, 128, 8
        $region76: #{decode.1} parent=11 // pred_fallthru
          _
        // Predicated region
        $region77: #{decode.1} parent=11 // pred_check
          %p673 = pneg %p430
        $region78: #{decode.1} parent=11 // pred_check_branch
          %675 = sbr.rel (%p673) target = $region80
        $region79: #{decode.1} parent=11 // pred_region
          %s677 = ssub.s32 16, 16
          %678 = vsyncadd [#allocation20], %s677
          %s680 = sshll.u32 [#allocation21], 4
          %s681 = int_to_ptr.vmem [resolvable:$true] %s680
          %683 = dma.hbm_to_vmem [thread:$0]  %s18, 16, %s681, [#allocation20]
        $region80: #{decode.1} parent=11 // pred_fallthru
          _
      $region12: #{decode.1} parent=5 // pred_fallthru
        _
      %p684 = scmp.lt.s32.totalorder %s45, 6
      // Predicated region
      $region81: #{decode.1} parent=5 // pred_check
        %p685 = pneg %p684
      $region82: #{decode.1} parent=5 // pred_check_branch
        %687 = sbr.rel (%p685) target = $region84
      $region83: #{decode.1} parent=5 // pred_region
        // Predicated region
        $region85: #{decode.1} parent=83 // pred_check
          %p688 = pneg %p88
        $region86: #{decode.1} parent=83 // pred_check_branch
          %690 = sbr.rel (%p688) target = $region88
        $region87: #{decode.1} parent=83 // pred_region
          %s691 = sand.u32 %s78, 1
          %s692 = scalar_lea.sflag [#allocation9], %s691
          %s693 = sand.u32 %s78, 1
          %s694 = scalar_lea.vmem [#allocation8], %s693
          %s695 = sld [smem:[#allocation6 + %s45]]
          %s697 = ssub.s32 16, 16
          %698 = vsyncadd %s692, %s697
          %s699 = smul.addr %s695, 16
          %s700 = scalar_lea.hbm %s2, %s699
          %s702 = sshll.u32 %s694, 4
          %s703 = int_to_ptr.vmem [resolvable:$true] %s702
          %705 = dma.hbm_to_vmem [thread:$0]  %s700, 16, %s703, %s692
        $region88: #{decode.1} parent=83 // pred_fallthru
          _
      $region84: #{decode.1} parent=5 // pred_fallthru
        _
      %p706 = scmp.le.s32.totalorder 1, %s45
      %p707 = scmp.lt.s32.totalorder %s45, 7
      %p708 = pnand %p706, %p707
      %p709 = pneg %p708
      // Predicated region
      $region89: #{decode.1} parent=5 // pred_check
        _
      $region90: #{decode.1} parent=5 // pred_check_branch
        %711 = sbr.rel (%p708) target = $region92
      $region91: #{decode.1} parent=5 // pred_region
        %s712 = ssub.s32 %s45, 1
        %s713 = sand.u32 %s81, 1
        %s714 = scalar_lea.sflag [#allocation9], %s713
        %s715 = sand.u32 %s81, 1
        %s716 = scalar_lea.vmem [#allocation8], %s715
        // Predicated region
        $region93: #{decode.1} parent=91 // pred_check
          %p717 = pneg %p94
        $region94: #{decode.1} parent=91 // pred_check_branch
          %719 = sbr.rel (%p717) target = $region96
        $region95: #{decode.1} parent=91 // pred_region
          %720 = dma.done %s714, 16
        $region96: #{decode.1} parent=91 // pred_fallthru
          _
        // Predicated region
        $region97: #{decode.1} parent=91 // pred_check
          %p721 = pneg %p241
        $region98: #{decode.1} parent=91 // pred_check_branch
          %723 = sbr.rel (%p721) target = $region100
        $region99: #{decode.1} parent=91 // pred_region
          %724 = dma.done [#allocation11], 24576
        $region100: #{decode.1} parent=91 // pred_fallthru
          _
        // Predicated region
        $region101: #{decode.1} parent=91 // pred_check
          %p725 = pneg %p262
        $region102: #{decode.1} parent=91 // pred_check_branch
          %727 = sbr.rel (%p725) target = $region104
        $region103: #{decode.1} parent=91 // pred_region
          %728 = dma.done [#allocation11], 64
        $region104: #{decode.1} parent=91 // pred_fallthru
          _
        // Predicated region
        $region105: #{decode.1} parent=91 // pred_check
          %p729 = pneg %p304
        $region106: #{decode.1} parent=91 // pred_check_branch
          %731 = sbr.rel (%p729) target = $region108
        $region107: #{decode.1} parent=91 // pred_region
          %732 = dma.done [#allocation14], 16
        $region108: #{decode.1} parent=91 // pred_fallthru
          _
        // Predicated region
        $region109: #{decode.1} parent=91 // pred_check
          %p733 = pneg %p325
        $region110: #{decode.1} parent=91 // pred_check_branch
          %735 = sbr.rel (%p733) target = $region112
        $region111: #{decode.1} parent=91 // pred_region
          %736 = dma.done [#allocation14], 16
        $region112: #{decode.1} parent=91 // pred_fallthru
          _
        // Predicated region
        $region113: #{decode.1} parent=91 // pred_check
          %p737 = pneg %p346
        $region114: #{decode.1} parent=91 // pred_check_branch
          %739 = sbr.rel (%p737) target = $region116
        $region115: #{decode.1} parent=91 // pred_region
          %740 = dma.done [#allocation17], 16
        $region116: #{decode.1} parent=91 // pred_fallthru
          _
        // Predicated region
        $region117: #{decode.1} parent=91 // pred_check
          %p741 = pneg %p388
        $region118: #{decode.1} parent=91 // pred_check_branch
          %743 = sbr.rel (%p741) target = $region120
        $region119: #{decode.1} parent=91 // pred_region
          %744 = dma.done [#allocation17], 16
        $region120: #{decode.1} parent=91 // pred_fallthru
          _
        // Predicated region
        $region121: #{decode.1} parent=91 // pred_check
          %p745 = pneg %p409
        $region122: #{decode.1} parent=91 // pred_check_branch
          %747 = sbr.rel (%p745) target = $region124
        $region123: #{decode.1} parent=91 // pred_region
          %748 = dma.done [#allocation20], 2048
        $region124: #{decode.1} parent=91 // pred_fallthru
          _
        // Predicated region
        $region125: #{decode.1} parent=91 // pred_check
          %p749 = pneg %p430
        $region126: #{decode.1} parent=91 // pred_check_branch
          %751 = sbr.rel (%p749) target = $region128
        $region127: #{decode.1} parent=91 // pred_region
          %752 = dma.done [#allocation20], 16
        $region128: #{decode.1} parent=91 // pred_fallthru
          _
        %p753 = pneg %p66
        %p754 = pneg %p63
        %s755 = sand.u32 %s81, 1
        %s756 = scalar_lea.sflag [#allocation9], %s755
        %s757 = sand.u32 %s81, 1
        %s758 = scalar_lea.vmem [#allocation8], %s757
        %p759 = pneg %p94
        %p760 = pneg %p91
        %p761 = pneg %p115
        %p762 = pneg %p112
        %p763 = pneg %p136
        %p764 = pneg %p133
        %p765 = pneg %p157
        %p766 = pneg %p154
        %p767 = pneg %p178
        %p768 = pneg %p175
        %p769 = pneg %p199
        %p770 = pneg %p196
        %p771 = pneg %p220
        %p772 = pneg %p217
        %p773 = pneg %p241
        %p774 = pneg %p238
        %p775 = pneg %p262
        %p776 = pneg %p259
        %p777 = pneg %p283
        %p778 = pneg %p280
        %p779 = pneg %p304
        %p780 = pneg %p301
        %p781 = pneg %p325
        %p782 = pneg %p322
        %p783 = pneg %p346
        %p784 = pneg %p343
        %p785 = pneg %p367
        %p786 = pneg %p364
        %p787 = pneg %p388
        %p788 = pneg %p385
        %p789 = pneg %p409
        %p790 = pneg %p406
        %p791 = pneg %p430
        %p792 = pneg %p427
        %p793 = pneg %p456
        %p794 = pneg %p453
        %p795 = scmp.lt.s32.totalorder %s50, 5
        %s796 = scalar_select %p795, %s50, 5
        %s797 = scalar_lea.vmem %s19, %s796
        %p798 = pneg %p482
        %p799 = pneg %p479
        %p800 = scmp.lt.s32.totalorder %s50, 5
        %s801 = scalar_select %p800, %s50, 5
        %s802 = scalar_lea.vmem %s20, %s801
        %p803 = pneg %p508
        %p804 = pneg %p505
        %p805 = scmp.lt.s32.totalorder %s50, 5
        %s806 = scalar_select %p805, %s50, 5
        %s807 = scalar_lea.vmem %s21, %s806
        %p808 = pneg %p529
        %p809 = pneg %p526
        %p810 = pneg %p550
        %p811 = pneg %p547
        %s812 = sld [smem:[#allocation6 + %s50]]
        %p813 = scmp.lt.s32.totalorder %s50, 5
        %s814 = scalar_select %p813, %s50, 5
        %s815 = scalar_lea.vmem %s19, %s814
        %p816 = scmp.lt.s32.totalorder %s50, 5
        %s817 = scalar_select %p816, %s50, 5
        %s818 = scalar_lea.vmem %s20, %s817
        %p819 = scmp.lt.s32.totalorder %s50, 5
        %s820 = scalar_select %p819, %s50, 5
        %s821 = scalar_lea.vmem %s21, %s820
        %p822 = scmp.eq.s32.totalorder %s50, 0
        // Predicated region
        $region129: #{decode.1} parent=91 // pred_check
          %p823 = pneg %p822
        $region130: #{decode.1} parent=91 // pred_check_branch
          %825 = sbr.rel (%p823) target = $region132
        $region131: #{decode.1} parent=91 // pred_region
          %v826 = vld [vmem:[%s3] sm:$0x1]
          %827 = vst [vmem:[#allocation2] sm:$0x1] %v826
          %v828 = vld [vmem:[%s4] sm:$0x1]
          %829 = vst [vmem:[#allocation3] sm:$0x1] %v828
          %v830 = vld [vmem:[%s5] sm:$0x1]
          %831 = vst [vmem:[#allocation4] sm:$0x1] %v830
        $region132: #{decode.1} parent=91 // pred_fallthru
          _
        %v832 = vld [vmem:[%s716] sm:$0x1]
        %v833 = vld [vmem:[#allocation2] sm:$0x1]
        %v834 = vld [vmem:[#allocation3] sm:$0x1]
        %v835 = vld [vmem:[#allocation4] sm:$0x1]
        %v836 = vld [vmem:[#allocation10] sm:$0xff]
        %v837 = vld [vmem:[#allocation10 + $0x8] sm:$0xff]
        %v838 = vld [vmem:[#allocation10 + $0x10] sm:$0xff]
        %v839 = vld [vmem:[#allocation10 + $0x18] sm:$0xff]
        %v840 = vld [vmem:[#allocation10 + $0x20] sm:$0xff]
        %v841 = vld [vmem:[#allocation10 + $0x28] sm:$0xff]
        %v842 = vld [vmem:[#allocation10 + $0x30] sm:$0xff]
        %v843 = vld [vmem:[#allocation10 + $0x38] sm:$0xff]
        %v844 = vld [vmem:[#allocation10 + $0x40] sm:$0xff]
        %v845 = vld [vmem:[#allocation10 + $0x48] sm:$0xff]
        %v846 = vld [vmem:[#allocation10 + $0x50] sm:$0xff]
        %v847 = vld [vmem:[#allocation10 + $0x58] sm:$0xff]
        %v848 = vld [vmem:[#allocation10 + $0x60] sm:$0xff]
        %v849 = vld [vmem:[#allocation10 + $0x68] sm:$0xff]
        %v850 = vld [vmem:[#allocation10 + $0x70] sm:$0xff]
        %v851 = vld [vmem:[#allocation10 + $0x78] sm:$0xff]
        %v852 = vld [vmem:[#allocation10 + $0x80] sm:$0xff]
        %v853 = vld [vmem:[#allocation10 + $0x88] sm:$0xff]
        %v854 = vld [vmem:[#allocation10 + $0x90] sm:$0xff]
        %v855 = vld [vmem:[#allocation10 + $0x98] sm:$0xff]
        %v856 = vld [vmem:[#allocation10 + $0xa0] sm:$0xff]
        %v857 = vld [vmem:[#allocation10 + $0xa8] sm:$0xff]
        %v858 = vld [vmem:[#allocation10 + $0xb0] sm:$0xff]
        %v859 = vld [vmem:[#allocation10 + $0xb8] sm:$0xff]
        %v860 = vld [vmem:[#allocation10 + $0xc0] sm:$0xff]
        %v861 = vld [vmem:[#allocation10 + $0xc8] sm:$0xff]
        %v862 = vld [vmem:[#allocation10 + $0xd0] sm:$0xff]
        %v863 = vld [vmem:[#allocation10 + $0xd8] sm:$0xff]
        %v864 = vld [vmem:[#allocation10 + $0xe0] sm:$0xff]
        %v865 = vld [vmem:[#allocation10 + $0xe8] sm:$0xff]
        %v866 = vld [vmem:[#allocation10 + $0xf0] sm:$0xff]
        %v867 = vld [vmem:[#allocation10 + $0xf8] sm:$0xff]
        %v868 = vld [vmem:[#allocation10 + $0x100] sm:$0xff]
        %v869 = vld [vmem:[#allocation10 + $0x108] sm:$0xff]
        %v870 = vld [vmem:[#allocation10 + $0x110] sm:$0xff]
        %v871 = vld [vmem:[#allocation10 + $0x118] sm:$0xff]
        %v872 = vld [vmem:[#allocation10 + $0x120] sm:$0xff]
        %v873 = vld [vmem:[#allocation10 + $0x128] sm:$0xff]
        %v874 = vld [vmem:[#allocation10 + $0x130] sm:$0xff]
        %v875 = vld [vmem:[#allocation10 + $0x138] sm:$0xff]
        %v876 = vld [vmem:[#allocation10 + $0x140] sm:$0xff]
        %v877 = vld [vmem:[#allocation10 + $0x148] sm:$0xff]
        %v878 = vld [vmem:[#allocation10 + $0x150] sm:$0xff]
        %v879 = vld [vmem:[#allocation10 + $0x158] sm:$0xff]
        %v880 = vld [vmem:[#allocation10 + $0x160] sm:$0xff]
        %v881 = vld [vmem:[#allocation10 + $0x168] sm:$0xff]
        %v882 = vld [vmem:[#allocation10 + $0x170] sm:$0xff]
        %v883 = vld [vmem:[#allocation10 + $0x178] sm:$0xff]
        %v884 = vld [vmem:[#allocation10 + $0x180] sm:$0xff]
        %v885 = vld [vmem:[#allocation10 + $0x188] sm:$0xff]
        %v886 = vld [vmem:[#allocation10 + $0x190] sm:$0xff]
        %v887 = vld [vmem:[#allocation10 + $0x198] sm:$0xff]
        %v888 = vld [vmem:[#allocation10 + $0x1a0] sm:$0xff]
        %v889 = vld [vmem:[#allocation10 + $0x1a8] sm:$0xff]
        %v890 = vld [vmem:[#allocation10 + $0x1b0] sm:$0xff]
        %v891 = vld [vmem:[#allocation10 + $0x1b8] sm:$0xff]
        %v892 = vld [vmem:[#allocation10 + $0x1c0] sm:$0xff]
        %v893 = vld [vmem:[#allocation10 + $0x1c8] sm:$0xff]
        %v894 = vld [vmem:[#allocation10 + $0x1d0] sm:$0xff]
        %v895 = vld [vmem:[#allocation10 + $0x1d8] sm:$0xff]
        %v896 = vld [vmem:[#allocation10 + $0x1e0] sm:$0xff]
        %v897 = vld [vmem:[#allocation10 + $0x1e8] sm:$0xff]
        %v898 = vld [vmem:[#allocation10 + $0x1f0] sm:$0xff]
        %v899 = vld [vmem:[#allocation10 + $0x1f8] sm:$0xff]
        %v900 = vld [vmem:[#allocation10 + $0x200] sm:$0xff]
        %v901 = vld [vmem:[#allocation10 + $0x208] sm:$0xff]
        %v902 = vld [vmem:[#allocation10 + $0x210] sm:$0xff]
        %v903 = vld [vmem:[#allocation10 + $0x218] sm:$0xff]
        %v904 = vld [vmem:[#allocation10 + $0x220] sm:$0xff]
        %v905 = vld [vmem:[#allocation10 + $0x228] sm:$0xff]
        %v906 = vld [vmem:[#allocation10 + $0x230] sm:$0xff]
        %v907 = vld [vmem:[#allocation10 + $0x238] sm:$0xff]
        %v908 = vld [vmem:[#allocation10 + $0x240] sm:$0xff]
        %v909 = vld [vmem:[#allocation10 + $0x248] sm:$0xff]
        %v910 = vld [vmem:[#allocation10 + $0x250] sm:$0xff]
        %v911 = vld [vmem:[#allocation10 + $0x258] sm:$0xff]
        %v912 = vld [vmem:[#allocation10 + $0x260] sm:$0xff]
        %v913 = vld [vmem:[#allocation10 + $0x268] sm:$0xff]
        %v914 = vld [vmem:[#allocation10 + $0x270] sm:$0xff]
        %v915 = vld [vmem:[#allocation10 + $0x278] sm:$0xff]
        %v916 = vld [vmem:[#allocation10 + $0x280] sm:$0xff]
        %v917 = vld [vmem:[#allocation10 + $0x288] sm:$0xff]
        %v918 = vld [vmem:[#allocation10 + $0x290] sm:$0xff]
        %v919 = vld [vmem:[#allocation10 + $0x298] sm:$0xff]
        %v920 = vld [vmem:[#allocation10 + $0x2a0] sm:$0xff]
        %v921 = vld [vmem:[#allocation10 + $0x2a8] sm:$0xff]
        %v922 = vld [vmem:[#allocation10 + $0x2b0] sm:$0xff]
        %v923 = vld [vmem:[#allocation10 + $0x2b8] sm:$0xff]
        %v924 = vld [vmem:[#allocation10 + $0x2c0] sm:$0xff]
        %v925 = vld [vmem:[#allocation10 + $0x2c8] sm:$0xff]
        %v926 = vld [vmem:[#allocation10 + $0x2d0] sm:$0xff]
        %v927 = vld [vmem:[#allocation10 + $0x2d8] sm:$0xff]
        %v928 = vld [vmem:[#allocation10 + $0x2e0] sm:$0xff]
        %v929 = vld [vmem:[#allocation10 + $0x2e8] sm:$0xff]
        %v930 = vld [vmem:[#allocation10 + $0x2f0] sm:$0xff]
        %v931 = vld [vmem:[#allocation10 + $0x2f8] sm:$0xff]
        %v932 = vld [vmem:[#allocation10 + $0x300] sm:$0xff]
        %v933 = vld [vmem:[#allocation10 + $0x308] sm:$0xff]
        %v934 = vld [vmem:[#allocation10 + $0x310] sm:$0xff]
        %v935 = vld [vmem:[#allocation10 + $0x318] sm:$0xff]
        %v936 = vld [vmem:[#allocation10 + $0x320] sm:$0xff]
        %v937 = vld [vmem:[#allocation10 + $0x328] sm:$0xff]
        %v938 = vld [vmem:[#allocation10 + $0x330] sm:$0xff]
        %v939 = vld [vmem:[#allocation10 + $0x338] sm:$0xff]
        %v940 = vld [vmem:[#allocation10 + $0x340] sm:$0xff]
        %v941 = vld [vmem:[#allocation10 + $0x348] sm:$0xff]
        %v942 = vld [vmem:[#allocation10 + $0x350] sm:$0xff]
        %v943 = vld [vmem:[#allocation10 + $0x358] sm:$0xff]
        %v944 = vld [vmem:[#allocation10 + $0x360] sm:$0xff]
        %v945 = vld [vmem:[#allocation10 + $0x368] sm:$0xff]
        %v946 = vld [vmem:[#allocation10 + $0x370] sm:$0xff]
        %v947 = vld [vmem:[#allocation10 + $0x378] sm:$0xff]
        %v948 = vld [vmem:[#allocation10 + $0x380] sm:$0xff]
        %v949 = vld [vmem:[#allocation10 + $0x388] sm:$0xff]
        %v950 = vld [vmem:[#allocation10 + $0x390] sm:$0xff]
        %v951 = vld [vmem:[#allocation10 + $0x398] sm:$0xff]
        %v952 = vld [vmem:[#allocation10 + $0x3a0] sm:$0xff]
        %v953 = vld [vmem:[#allocation10 + $0x3a8] sm:$0xff]
        %v954 = vld [vmem:[#allocation10 + $0x3b0] sm:$0xff]
        %v955 = vld [vmem:[#allocation10 + $0x3b8] sm:$0xff]
        %v956 = vld [vmem:[#allocation10 + $0x3c0] sm:$0xff]
        %v957 = vld [vmem:[#allocation10 + $0x3c8] sm:$0xff]
        %v958 = vld [vmem:[#allocation10 + $0x3d0] sm:$0xff]
        %v959 = vld [vmem:[#allocation10 + $0x3d8] sm:$0xff]
        %v960 = vld [vmem:[#allocation10 + $0x3e0] sm:$0xff]
        %v961 = vld [vmem:[#allocation10 + $0x3e8] sm:$0xff]
        %v962 = vld [vmem:[#allocation10 + $0x3f0] sm:$0xff]
        %v963 = vld [vmem:[#allocation10 + $0x3f8] sm:$0xff]
        %v964 = vld [vmem:[#allocation10 + $0x400] sm:$0xff]
        %v965 = vld [vmem:[#allocation10 + $0x408] sm:$0xff]
        %v966 = vld [vmem:[#allocation10 + $0x410] sm:$0xff]
        %v967 = vld [vmem:[#allocation10 + $0x418] sm:$0xff]
        %v968 = vld [vmem:[#allocation10 + $0x420] sm:$0xff]
        %v969 = vld [vmem:[#allocation10 + $0x428] sm:$0xff]
        %v970 = vld [vmem:[#allocation10 + $0x430] sm:$0xff]
        %v971 = vld [vmem:[#allocation10 + $0x438] sm:$0xff]
        %v972 = vld [vmem:[#allocation10 + $0x440] sm:$0xff]
        %v973 = vld [vmem:[#allocation10 + $0x448] sm:$0xff]
        %v974 = vld [vmem:[#allocation10 + $0x450] sm:$0xff]
        %v975 = vld [vmem:[#allocation10 + $0x458] sm:$0xff]
        %v976 = vld [vmem:[#allocation10 + $0x460] sm:$0xff]
        %v977 = vld [vmem:[#allocation10 + $0x468] sm:$0xff]
        %v978 = vld [vmem:[#allocation10 + $0x470] sm:$0xff]
        %v979 = vld [vmem:[#allocation10 + $0x478] sm:$0xff]
        %v980 = vld [vmem:[#allocation10 + $0x480] sm:$0xff]
        %v981 = vld [vmem:[#allocation10 + $0x488] sm:$0xff]
        %v982 = vld [vmem:[#allocation10 + $0x490] sm:$0xff]
        %v983 = vld [vmem:[#allocation10 + $0x498] sm:$0xff]
        %v984 = vld [vmem:[#allocation10 + $0x4a0] sm:$0xff]
        %v985 = vld [vmem:[#allocation10 + $0x4a8] sm:$0xff]
        %v986 = vld [vmem:[#allocation10 + $0x4b0] sm:$0xff]
        %v987 = vld [vmem:[#allocation10 + $0x4b8] sm:$0xff]
        %v988 = vld [vmem:[#allocation10 + $0x4c0] sm:$0xff]
        %v989 = vld [vmem:[#allocation10 + $0x4c8] sm:$0xff]
        %v990 = vld [vmem:[#allocation10 + $0x4d0] sm:$0xff]
        %v991 = vld [vmem:[#allocation10 + $0x4d8] sm:$0xff]
        %v992 = vld [vmem:[#allocation10 + $0x4e0] sm:$0xff]
        %v993 = vld [vmem:[#allocation10 + $0x4e8] sm:$0xff]
        %v994 = vld [vmem:[#allocation10 + $0x4f0] sm:$0xff]
        %v995 = vld [vmem:[#allocation10 + $0x4f8] sm:$0xff]
        %v996 = vld [vmem:[#allocation10 + $0x500] sm:$0xff]
        %v997 = vld [vmem:[#allocation10 + $0x508] sm:$0xff]
        %v998 = vld [vmem:[#allocation10 + $0x510] sm:$0xff]
        %v999 = vld [vmem:[#allocation10 + $0x518] sm:$0xff]
        %v1000 = vld [vmem:[#allocation10 + $0x520] sm:$0xff]
        %v1001 = vld [vmem:[#allocation10 + $0x528] sm:$0xff]
        %v1002 = vld [vmem:[#allocation10 + $0x530] sm:$0xff]
        %v1003 = vld [vmem:[#allocation10 + $0x538] sm:$0xff]
        %v1004 = vld [vmem:[#allocation10 + $0x540] sm:$0xff]
        %v1005 = vld [vmem:[#allocation10 + $0x548] sm:$0xff]
        %v1006 = vld [vmem:[#allocation10 + $0x550] sm:$0xff]
        %v1007 = vld [vmem:[#allocation10 + $0x558] sm:$0xff]
        %v1008 = vld [vmem:[#allocation10 + $0x560] sm:$0xff]
        %v1009 = vld [vmem:[#allocation10 + $0x568] sm:$0xff]
        %v1010 = vld [vmem:[#allocation10 + $0x570] sm:$0xff]
        %v1011 = vld [vmem:[#allocation10 + $0x578] sm:$0xff]
        %v1012 = vld [vmem:[#allocation10 + $0x580] sm:$0xff]
        %v1013 = vld [vmem:[#allocation10 + $0x588] sm:$0xff]
        %v1014 = vld [vmem:[#allocation10 + $0x590] sm:$0xff]
        %v1015 = vld [vmem:[#allocation10 + $0x598] sm:$0xff]
        %v1016 = vld [vmem:[#allocation10 + $0x5a0] sm:$0xff]
        %v1017 = vld [vmem:[#allocation10 + $0x5a8] sm:$0xff]
        %v1018 = vld [vmem:[#allocation10 + $0x5b0] sm:$0xff]
        %v1019 = vld [vmem:[#allocation10 + $0x5b8] sm:$0xff]
        %v1020 = vld [vmem:[#allocation10 + $0x5c0] sm:$0xff]
        %v1021 = vld [vmem:[#allocation10 + $0x5c8] sm:$0xff]
        %v1022 = vld [vmem:[#allocation10 + $0x5d0] sm:$0xff]
        %v1023 = vld [vmem:[#allocation10 + $0x5d8] sm:$0xff]
        %v1024 = vld [vmem:[#allocation10 + $0x5e0] sm:$0xff]
        %v1025 = vld [vmem:[#allocation10 + $0x5e8] sm:$0xff]
        %v1026 = vld [vmem:[#allocation10 + $0x5f0] sm:$0xff]
        %v1027 = vld [vmem:[#allocation10 + $0x5f8] sm:$0xff]
        %v1028 = vld [vmem:[#allocation12] sm:$0xf]
        %v1030 = vlaneseq
        %v1031 = vshrl.u32 %v1030, 7
        %v1032 = vsub.s32 0, %v1031
        %v1033 = vrot.slane %v1028, %v1032
        %v1034 = vlaneseq
        %v1035 = vshrl.u32 %v1034, 7
        %v1036 = vsub.s32 1, %v1035
        %v1037 = vrot.slane %v1028, %v1036
        %v1038 = vlaneseq
        %v1039 = vshrl.u32 %v1038, 7
        %v1040 = vsub.s32 2, %v1039
        %v1041 = vrot.slane %v1028, %v1040
        %v1042 = vlaneseq
        %v1043 = vshrl.u32 %v1042, 7
        %v1044 = vsub.s32 3, %v1043
        %v1045 = vrot.slane %v1028, %v1044
        %1050 = vmatprep.subr.mxu0 %v897
        %1051 = vmatpush1.msra.mxu0 %v896
        %1052 = vmatprep.subr.mxu0 %v893
        %1053 = vmatpush1.msra.mxu0 %v892
        %1054 = vmatprep.subr.mxu0 %v889
        %1055 = vmatpush1.msra.mxu0 %v888
        %1056 = vmatprep.subr.mxu0 %v885
        %1057 = vmatpush1.msra.mxu0 %v884
        %1058 = vmatprep.subr.mxu0 %v881
        %1059 = vmatpush1.msra.mxu0 %v880
        %1060 = vmatprep.subr.mxu0 %v877
        %1061 = vmatpush1.msra.mxu0 %v876
        %1062 = vmatprep.subr.mxu0 %v873
        %1063 = vmatpush1.msra.mxu0 %v872
        %1064 = vmatprep.subr.mxu0 %v869
        %1065 = vmatpush1.msra.mxu0 %v868
        %1066 = vmatprep.subr.mxu0 %v865
        %1067 = vmatpush1.msra.mxu0 %v864
        %1068 = vmatprep.subr.mxu0 %v861
        %1069 = vmatpush1.msra.mxu0 %v860
        %1070 = vmatprep.subr.mxu0 %v857
        %1071 = vmatpush1.msra.mxu0 %v856
        %1072 = vmatprep.subr.mxu0 %v853
        %1073 = vmatpush1.msra.mxu0 %v852
        %1074 = vmatprep.subr.mxu0 %v849
        %1075 = vmatpush1.msra.mxu0 %v848
        %1076 = vmatprep.subr.mxu0 %v845
        %1077 = vmatpush1.msra.mxu0 %v844
        %1078 = vmatprep.subr.mxu0 %v841
        %1079 = vmatpush1.msra.mxu0 %v840
        %1080 = vmatprep.subr.mxu0 %v837
        %1081 = vmatpush1.msra.mxu0 %v836
        %1082 = vmatprep.subr.mxu0 %v961
        %1083 = vmatpush2.msra.mxu0 %v960
        %1084 = vmatprep.subr.mxu0 %v957
        %1085 = vmatpush2.msra.mxu0 %v956
        %1086 = vmatprep.subr.mxu0 %v953
        %1087 = vmatpush2.msra.mxu0 %v952
        %1088 = vmatprep.subr.mxu0 %v949
        %1089 = vmatpush2.msra.mxu0 %v948
        %1090 = vmatprep.subr.mxu0 %v945
        %1091 = vmatpush2.msra.mxu0 %v944
        %1092 = vmatprep.subr.mxu0 %v941
        %1093 = vmatpush2.msra.mxu0 %v940
        %1094 = vmatprep.subr.mxu0 %v937
        %1095 = vmatpush2.msra.mxu0 %v936
        %1096 = vmatprep.subr.mxu0 %v933
        %1097 = vmatpush2.msra.mxu0 %v932
        %1098 = vmatprep.subr.mxu0 %v929
        %1099 = vmatpush2.msra.mxu0 %v928
        %1100 = vmatprep.subr.mxu0 %v925
        %1101 = vmatpush2.msra.mxu0 %v924
        %1102 = vmatprep.subr.mxu0 %v921
        %1103 = vmatpush2.msra.mxu0 %v920
        %1104 = vmatprep.subr.mxu0 %v917
        %1105 = vmatpush2.msra.mxu0 %v916
        %1106 = vmatprep.subr.mxu0 %v913
        %1107 = vmatpush2.msra.mxu0 %v912
        %1108 = vmatprep.subr.mxu0 %v909
        %1109 = vmatpush2.msra.mxu0 %v908
        %1110 = vmatprep.subr.mxu0 %v905
        %1111 = vmatpush2.msra.mxu0 %v904
        %1112 = vmatprep.subr.mxu0 %v901
        %1113 = vmatpush2.msra.mxu0 %v900
        %1114 = vmatprep.mubr.f32.mxu0 %v835
        %1115 = vmatmul.mubr.f32.gmra.mxu0 %v832
        %v1116 = vpop.f32.mrf.mxu0
        %v1117 = vadd.f32 %v1033, %v1116
        %v1118 = vpop.f32.mrf.mxu0
        %v1119 = vadd.f32 %v1037, %v1118
        %1120 = vdwg.mxu0
        %1121 = vmatprep.subr.mxu0 %v1025
        %1122 = vmatpush1.msra.mxu0 %v1024
        %1123 = vmatprep.subr.mxu0 %v1021
        %1124 = vmatpush1.msra.mxu0 %v1020
        %1125 = vmatprep.subr.mxu0 %v1017
        %1126 = vmatpush1.msra.mxu0 %v1016
        %1127 = vmatprep.subr.mxu0 %v1013
        %1128 = vmatpush1.msra.mxu0 %v1012
        %1129 = vmatprep.subr.mxu0 %v1009
        %1130 = vmatpush1.msra.mxu0 %v1008
        %1131 = vmatprep.subr.mxu0 %v1005
        %1132 = vmatpush1.msra.mxu0 %v1004
        %1133 = vmatprep.subr.mxu0 %v1001
        %1134 = vmatpush1.msra.mxu0 %v1000
        %1135 = vmatprep.subr.mxu0 %v997
        %1136 = vmatpush1.msra.mxu0 %v996
        %1137 = vmatprep.subr.mxu0 %v993
        %1138 = vmatpush1.msra.mxu0 %v992
        %1139 = vmatprep.subr.mxu0 %v989
        %1140 = vmatpush1.msra.mxu0 %v988
        %1141 = vmatprep.subr.mxu0 %v985
        %1142 = vmatpush1.msra.mxu0 %v984
        %1143 = vmatprep.subr.mxu0 %v981
        %1144 = vmatpush1.msra.mxu0 %v980
        %1145 = vmatprep.subr.mxu0 %v977
        %1146 = vmatpush1.msra.mxu0 %v976
        %1147 = vmatprep.subr.mxu0 %v973
        %1148 = vmatpush1.msra.mxu0 %v972
        %1149 = vmatprep.subr.mxu0 %v969
        %1150 = vmatpush1.msra.mxu0 %v968
        %1151 = vmatprep.subr.mxu0 %v965
        %1152 = vmatpush1.msra.mxu0 %v964
        %1153 = vmatprep.subr.mxu0 0.0
        %1154 = vmatpush2.msra.mxu0 0.0
        %1155 = vmatprep.subr.mxu0 0.0
        %1156 = vmatpush2.msra.mxu0 0.0
        %1157 = vmatprep.subr.mxu0 0.0
        %1158 = vmatpush2.msra.mxu0 0.0
        %1159 = vmatprep.subr.mxu0 0.0
        %1160 = vmatpush2.msra.mxu0 0.0
        %1161 = vmatprep.subr.mxu0 0.0
        %1162 = vmatpush2.msra.mxu0 0.0
        %1163 = vmatprep.subr.mxu0 0.0
        %1164 = vmatpush2.msra.mxu0 0.0
        %1165 = vmatprep.subr.mxu0 0.0
        %1166 = vmatpush2.msra.mxu0 0.0
        %1167 = vmatprep.subr.mxu0 0.0
        %1168 = vmatpush2.msra.mxu0 0.0
        %1169 = vmatprep.subr.mxu0 0.0
        %1170 = vmatpush2.msra.mxu0 0.0
        %1171 = vmatprep.subr.mxu0 0.0
        %1172 = vmatpush2.msra.mxu0 0.0
        %1173 = vmatprep.subr.mxu0 0.0
        %1174 = vmatpush2.msra.mxu0 0.0
        %1175 = vmatprep.subr.mxu0 0.0
        %1176 = vmatpush2.msra.mxu0 0.0
        %1177 = vmatprep.subr.mxu0 0.0
        %1178 = vmatpush2.msra.mxu0 0.0
        %1179 = vmatprep.subr.mxu0 0.0
        %1180 = vmatpush2.msra.mxu0 0.0
        %1181 = vmatprep.subr.mxu0 0.0
        %1182 = vmatpush2.msra.mxu0 0.0
        %1183 = vmatprep.subr.mxu0 0.0
        %1184 = vmatpush2.msra.mxu0 0.0
        %1185 = vmatprep.mubr.f32.mxu0 0.0
        %1186 = vmatmul.mubr.f32.gmra.mxu0 %v833
        %v1187 = vpop.f32.mrf.mxu0
        %v1188 = vadd.f32 %v1117, %v1187
        %v1189 = vpop.f32.mrf.mxu0
        %v1190 = vadd.f32 %v1119, %v1189
        %1191 = vdwg.mxu0
        %1192 = vmatprep.subr.mxu0 %v899
        %1193 = vmatpush1.msra.mxu0 %v898
        %1194 = vmatprep.subr.mxu0 %v895
        %1195 = vmatpush1.msra.mxu0 %v894
        %1196 = vmatprep.subr.mxu0 %v891
        %1197 = vmatpush1.msra.mxu0 %v890
        %1198 = vmatprep.subr.mxu0 %v887
        %1199 = vmatpush1.msra.mxu0 %v886
        %1200 = vmatprep.subr.mxu0 %v883
        %1201 = vmatpush1.msra.mxu0 %v882
        %1202 = vmatprep.subr.mxu0 %v879
        %1203 = vmatpush1.msra.mxu0 %v878
        %1204 = vmatprep.subr.mxu0 %v875
        %1205 = vmatpush1.msra.mxu0 %v874
        %1206 = vmatprep.subr.mxu0 %v871
        %1207 = vmatpush1.msra.mxu0 %v870
        %1208 = vmatprep.subr.mxu0 %v867
        %1209 = vmatpush1.msra.mxu0 %v866
        %1210 = vmatprep.subr.mxu0 %v863
        %1211 = vmatpush1.msra.mxu0 %v862
        %1212 = vmatprep.subr.mxu0 %v859
        %1213 = vmatpush1.msra.mxu0 %v858
        %1214 = vmatprep.subr.mxu0 %v855
        %1215 = vmatpush1.msra.mxu0 %v854
        %1216 = vmatprep.subr.mxu0 %v851
        %1217 = vmatpush1.msra.mxu0 %v850
        %1218 = vmatprep.subr.mxu0 %v847
        %1219 = vmatpush1.msra.mxu0 %v846
        %1220 = vmatprep.subr.mxu0 %v843
        %1221 = vmatpush1.msra.mxu0 %v842
        %1222 = vmatprep.subr.mxu0 %v839
        %1223 = vmatpush1.msra.mxu0 %v838
        %1224 = vmatprep.subr.mxu0 %v963
        %1225 = vmatpush2.msra.mxu0 %v962
        %1226 = vmatprep.subr.mxu0 %v959
        %1227 = vmatpush2.msra.mxu0 %v958
        %1228 = vmatprep.subr.mxu0 %v955
        %1229 = vmatpush2.msra.mxu0 %v954
        %1230 = vmatprep.subr.mxu0 %v951
        %1231 = vmatpush2.msra.mxu0 %v950
        %1232 = vmatprep.subr.mxu0 %v947
        %1233 = vmatpush2.msra.mxu0 %v946
        %1234 = vmatprep.subr.mxu0 %v943
        %1235 = vmatpush2.msra.mxu0 %v942
        %1236 = vmatprep.subr.mxu0 %v939
        %1237 = vmatpush2.msra.mxu0 %v938
        %1238 = vmatprep.subr.mxu0 %v935
        %1239 = vmatpush2.msra.mxu0 %v934
        %1240 = vmatprep.subr.mxu0 %v931
        %1241 = vmatpush2.msra.mxu0 %v930
        %1242 = vmatprep.subr.mxu0 %v927
        %1243 = vmatpush2.msra.mxu0 %v926
        %1244 = vmatprep.subr.mxu0 %v923
        %1245 = vmatpush2.msra.mxu0 %v922
        %1246 = vmatprep.subr.mxu0 %v919
        %1247 = vmatpush2.msra.mxu0 %v918
        %1248 = vmatprep.subr.mxu0 %v915
        %1249 = vmatpush2.msra.mxu0 %v914
        %1250 = vmatprep.subr.mxu0 %v911
        %1251 = vmatpush2.msra.mxu0 %v910
        %1252 = vmatprep.subr.mxu0 %v907
        %1253 = vmatpush2.msra.mxu0 %v906
        %1254 = vmatprep.subr.mxu0 %v903
        %1255 = vmatpush2.msra.mxu0 %v902
        %1256 = vmatprep.mubr.f32.mxu0 %v835
        %1257 = vmatmul.mubr.f32.gmra.mxu0 %v832
        %v1258 = vpop.f32.mrf.mxu0
        %v1259 = vadd.f32 %v1041, %v1258
        %v1260 = vpop.f32.mrf.mxu0
        %v1261 = vadd.f32 %v1045, %v1260
        %1262 = vdwg.mxu0
        %1263 = vmatprep.subr.mxu0 %v1027
        %1264 = vmatpush1.msra.mxu0 %v1026
        %1265 = vmatprep.subr.mxu0 %v1023
        %1266 = vmatpush1.msra.mxu0 %v1022
        %1267 = vmatprep.subr.mxu0 %v1019
        %1268 = vmatpush1.msra.mxu0 %v1018
        %1269 = vmatprep.subr.mxu0 %v1015
        %1270 = vmatpush1.msra.mxu0 %v1014
        %1271 = vmatprep.subr.mxu0 %v1011
        %1272 = vmatpush1.msra.mxu0 %v1010
        %1273 = vmatprep.subr.mxu0 %v1007
        %1274 = vmatpush1.msra.mxu0 %v1006
        %1275 = vmatprep.subr.mxu0 %v1003
        %1276 = vmatpush1.msra.mxu0 %v1002
        %1277 = vmatprep.subr.mxu0 %v999
        %1278 = vmatpush1.msra.mxu0 %v998
        %1279 = vmatprep.subr.mxu0 %v995
        %1280 = vmatpush1.msra.mxu0 %v994
        %1281 = vmatprep.subr.mxu0 %v991
        %1282 = vmatpush1.msra.mxu0 %v990
        %1283 = vmatprep.subr.mxu0 %v987
        %1284 = vmatpush1.msra.mxu0 %v986
        %1285 = vmatprep.subr.mxu0 %v983
        %1286 = vmatpush1.msra.mxu0 %v982
        %1287 = vmatprep.subr.mxu0 %v979
        %1288 = vmatpush1.msra.mxu0 %v978
        %1289 = vmatprep.subr.mxu0 %v975
        %1290 = vmatpush1.msra.mxu0 %v974
        %1291 = vmatprep.subr.mxu0 %v971
        %1292 = vmatpush1.msra.mxu0 %v970
        %1293 = vmatprep.subr.mxu0 %v967
        %1294 = vmatpush1.msra.mxu0 %v966
        %1295 = vmatprep.subr.mxu0 0.0
        %1296 = vmatpush2.msra.mxu0 0.0
        %1297 = vmatprep.subr.mxu0 0.0
        %1298 = vmatpush2.msra.mxu0 0.0
        %1299 = vmatprep.subr.mxu0 0.0
        %1300 = vmatpush2.msra.mxu0 0.0
        %1301 = vmatprep.subr.mxu0 0.0
        %1302 = vmatpush2.msra.mxu0 0.0
        %1303 = vmatprep.subr.mxu0 0.0
        %1304 = vmatpush2.msra.mxu0 0.0
        %1305 = vmatprep.subr.mxu0 0.0
        %1306 = vmatpush2.msra.mxu0 0.0
        %1307 = vmatprep.subr.mxu0 0.0
        %1308 = vmatpush2.msra.mxu0 0.0
        %1309 = vmatprep.subr.mxu0 0.0
        %1310 = vmatpush2.msra.mxu0 0.0
        %1311 = vmatprep.subr.mxu0 0.0
        %1312 = vmatpush2.msra.mxu0 0.0
        %1313 = vmatprep.subr.mxu0 0.0
        %1314 = vmatpush2.msra.mxu0 0.0
        %1315 = vmatprep.subr.mxu0 0.0
        %1316 = vmatpush2.msra.mxu0 0.0
        %1317 = vmatprep.subr.mxu0 0.0
        %1318 = vmatpush2.msra.mxu0 0.0
        %1319 = vmatprep.subr.mxu0 0.0
        %1320 = vmatpush2.msra.mxu0 0.0
        %1321 = vmatprep.subr.mxu0 0.0
        %1322 = vmatpush2.msra.mxu0 0.0
        %1323 = vmatprep.subr.mxu0 0.0
        %1324 = vmatpush2.msra.mxu0 0.0
        %1325 = vmatprep.subr.mxu0 0.0
        %1326 = vmatpush2.msra.mxu0 0.0
        %1327 = vmatprep.mubr.f32.mxu0 0.0
        %1328 = vmatmul.mubr.f32.gmra.mxu0 %v833
        %v1329 = vpop.f32.mrf.mxu0
        %v1330 = vadd.f32 %v1259, %v1329
        %v1331 = vpop.f32.mrf.mxu0
        %v1332 = vadd.f32 %v1261, %v1331
        %1333 = vdwg.mxu0
        %v1334 = vxor.u32 %v1188, 2147483648
        %v1335 = vmul.f32 %v1334, 1.442695
        %v1336 = vpow.pop %v1335
        %v1337 = vadd.f32 %v1336, 1.0
        %v1338 = vrcp.pop %v1337
        %v1339 = vmul.f32 1.0, %v1338
        %v1340 = vxor.u32 %v1190, 2147483648
        %v1341 = vmul.f32 %v1340, 1.442695
        %v1342 = vpow.pop %v1341
        %v1343 = vadd.f32 %v1342, 1.0
        %v1344 = vrcp.pop %v1343
        %v1345 = vmul.f32 1.0, %v1344
        %v1346 = vtanh.pop %v1330
        %v1347 = vxor.u32 %v1332, 2147483648
        %v1348 = vmul.f32 %v1347, 1.442695
        %v1349 = vpow.pop %v1348
        %v1350 = vadd.f32 %v1349, 1.0
        %v1351 = vrcp.pop %v1350
        %v1352 = vmul.f32 1.0, %v1351
        %v1353 = vmul.f32 %v1345, %v834
        %v1354 = vmul.f32 %v1339, %v1346
        %v1355 = vadd.f32 %v1353, %v1354
        %v1356 = vtanh.pop %v1355
        %v1357 = vmul.f32 %v1352, %v1356
        %1358 = vst [vmem:[#allocation2] sm:$0x1] %v1357
        %1359 = vst [vmem:[#allocation3] sm:$0x1] %v1355
        %1360 = vst [vmem:[%s22] sm:$0x1] %v1357
        %1361 = vst [vmem:[%s23] sm:$0x1] %v1355
        %v1362 = vld [vmem:[%s11] sm:$0xff]
        %v1363 = vld [vmem:[%s11 + $0x8] sm:$0xff]
        %v1364 = vld [vmem:[%s11 + $0x10] sm:$0xff]
        %v1365 = vld [vmem:[%s11 + $0x18] sm:$0xff]
        %v1366 = vld [vmem:[%s11 + $0x20] sm:$0xff]
        %v1367 = vld [vmem:[%s11 + $0x28] sm:$0xff]
        %v1368 = vld [vmem:[%s11 + $0x30] sm:$0xff]
        %v1369 = vld [vmem:[%s11 + $0x38] sm:$0xff]
        %v1370 = vld [vmem:[%s11 + $0x40] sm:$0xff]
        %v1371 = vld [vmem:[%s11 + $0x48] sm:$0xff]
        %v1372 = vld [vmem:[%s11 + $0x50] sm:$0xff]
        %v1373 = vld [vmem:[%s11 + $0x58] sm:$0xff]
        %v1374 = vld [vmem:[%s11 + $0x60] sm:$0xff]
        %v1375 = vld [vmem:[%s11 + $0x68] sm:$0xff]
        %v1376 = vld [vmem:[%s11 + $0x70] sm:$0xff]
        %v1377 = vld [vmem:[%s11 + $0x78] sm:$0xff]
        %v1378 = vld [vmem:[%s11 + $0x80] sm:$0xff]
        %v1379 = vld [vmem:[%s11 + $0x88] sm:$0xff]
        %v1380 = vld [vmem:[%s11 + $0x90] sm:$0xff]
        %v1381 = vld [vmem:[%s11 + $0x98] sm:$0xff]
        %v1382 = vld [vmem:[%s11 + $0xa0] sm:$0xff]
        %v1383 = vld [vmem:[%s11 + $0xa8] sm:$0xff]
        %v1384 = vld [vmem:[%s11 + $0xb0] sm:$0xff]
        %v1385 = vld [vmem:[%s11 + $0xb8] sm:$0xff]
        %v1386 = vld [vmem:[%s11 + $0xc0] sm:$0xff]
        %v1387 = vld [vmem:[%s11 + $0xc8] sm:$0xff]
        %v1388 = vld [vmem:[%s11 + $0xd0] sm:$0xff]
        %v1389 = vld [vmem:[%s11 + $0xd8] sm:$0xff]
        %v1390 = vld [vmem:[%s11 + $0xe0] sm:$0xff]
        %v1391 = vld [vmem:[%s11 + $0xe8] sm:$0xff]
        %v1392 = vld [vmem:[%s11 + $0xf0] sm:$0xff]
        %v1393 = vld [vmem:[%s11 + $0xf8] sm:$0xff]
        %v1394 = vld [vmem:[%s11 + $0x100] sm:$0xff]
        %v1395 = vld [vmem:[%s11 + $0x108] sm:$0xff]
        %v1396 = vld [vmem:[%s11 + $0x110] sm:$0xff]
        %v1397 = vld [vmem:[%s11 + $0x118] sm:$0xff]
        %v1398 = vld [vmem:[%s11 + $0x120] sm:$0xff]
        %v1399 = vld [vmem:[%s11 + $0x128] sm:$0xff]
        %v1400 = vld [vmem:[%s11 + $0x130] sm:$0xff]
        %v1401 = vld [vmem:[%s11 + $0x138] sm:$0xff]
        %v1402 = vld [vmem:[%s11 + $0x140] sm:$0xff]
        %v1403 = vld [vmem:[%s11 + $0x148] sm:$0xff]
        %v1404 = vld [vmem:[%s11 + $0x150] sm:$0xff]
        %v1405 = vld [vmem:[%s11 + $0x158] sm:$0xff]
        %v1406 = vld [vmem:[%s11 + $0x160] sm:$0xff]
        %v1407 = vld [vmem:[%s11 + $0x168] sm:$0xff]
        %v1408 = vld [vmem:[%s11 + $0x170] sm:$0xff]
        %v1409 = vld [vmem:[%s11 + $0x178] sm:$0xff]
        %1410 = vmatprep.subr.mxu0 %v1408
        %1411 = vmatpush1.msra.mxu0 %v1407
        %1412 = vmatprep.subr.mxu0 %v1405
        %1413 = vmatpush1.msra.mxu0 %v1404
        %1414 = vmatprep.subr.mxu0 %v1402
        %1415 = vmatpush1.msra.mxu0 %v1401
        %1416 = vmatprep.subr.mxu0 %v1399
        %1417 = vmatpush1.msra.mxu0 %v1398
        %1418 = vmatprep.subr.mxu0 %v1396
        %1419 = vmatpush1.msra.mxu0 %v1395
        %1420 = vmatprep.subr.mxu0 %v1393
        %1421 = vmatpush1.msra.mxu0 %v1392
        %1422 = vmatprep.subr.mxu0 %v1390
        %1423 = vmatpush1.msra.mxu0 %v1389
        %1424 = vmatprep.subr.mxu0 %v1387
        %1425 = vmatpush1.msra.mxu0 %v1386
        %1426 = vmatprep.subr.mxu0 %v1384
        %1427 = vmatpush1.msra.mxu0 %v1383
        %1428 = vmatprep.subr.mxu0 %v1381
        %1429 = vmatpush1.msra.mxu0 %v1380
        %1430 = vmatprep.subr.mxu0 %v1378
        %1431 = vmatpush1.msra.mxu0 %v1377
        %1432 = vmatprep.subr.mxu0 %v1375
        %1433 = vmatpush1.msra.mxu0 %v1374
        %1434 = vmatprep.subr.mxu0 %v1372
        %1435 = vmatpush1.msra.mxu0 %v1371
        %1436 = vmatprep.subr.mxu0 %v1369
        %1437 = vmatpush1.msra.mxu0 %v1368
        %1438 = vmatprep.subr.mxu0 %v1366
        %1439 = vmatpush1.msra.mxu0 %v1365
        %1440 = vmatprep.subr.mxu0 %v1363
        %1441 = vmatpush1.msra.mxu0 %v1362
        %1442 = vmatprep.subr.mxu0 0.0
        %1443 = vmatpush2.msra.mxu0 0.0
        %1444 = vmatprep.subr.mxu0 0.0
        %1445 = vmatpush2.msra.mxu0 0.0
        %1446 = vmatprep.subr.mxu0 0.0
        %1447 = vmatpush2.msra.mxu0 0.0
        %1448 = vmatprep.subr.mxu0 0.0
        %1449 = vmatpush2.msra.mxu0 0.0
        %1450 = vmatprep.subr.mxu0 0.0
        %1451 = vmatpush2.msra.mxu0 0.0
        %1452 = vmatprep.subr.mxu0 0.0
        %1453 = vmatpush2.msra.mxu0 0.0
        %1454 = vmatprep.subr.mxu0 0.0
        %1455 = vmatpush2.msra.mxu0 0.0
        %1456 = vmatprep.subr.mxu0 0.0
        %1457 = vmatpush2.msra.mxu0 0.0
        %1458 = vmatprep.subr.mxu0 0.0
        %1459 = vmatpush2.msra.mxu0 0.0
        %1460 = vmatprep.subr.mxu0 0.0
        %1461 = vmatpush2.msra.mxu0 0.0
        %1462 = vmatprep.subr.mxu0 0.0
        %1463 = vmatpush2.msra.mxu0 0.0
        %1464 = vmatprep.subr.mxu0 0.0
        %1465 = vmatpush2.msra.mxu0 0.0
        %1466 = vmatprep.subr.mxu0 0.0
        %1467 = vmatpush2.msra.mxu0 0.0
        %1468 = vmatprep.subr.mxu0 0.0
        %1469 = vmatpush2.msra.mxu0 0.0
        %1470 = vmatprep.subr.mxu0 0.0
        %1471 = vmatpush2.msra.mxu0 0.0
        %1472 = vmatprep.subr.mxu0 0.0
        %1473 = vmatpush2.msra.mxu0 0.0
        %1474 = vmatprep.mubr.f32.mxu0 0.0
        %1475 = vmatmul.mubr.f32.gmra.mxu0 %v1357
        %v1476 = vpop.f32.mrf.mxu0
        %v1477 = vadd.f32 0.0, %v1476
        %v1478 = vpop.f32.mrf.mxu0
        %v1479 = vadd.f32 0.0, %v1478
        %1480 = vdwg.mxu0
        %1481 = vmatprep.subr.mxu0 0.0
        %1482 = vmatpush1.msra.mxu0 %v1409
        %1483 = vmatprep.subr.mxu0 0.0
        %1484 = vmatpush1.msra.mxu0 %v1406
        %1485 = vmatprep.subr.mxu0 0.0
        %1486 = vmatpush1.msra.mxu0 %v1403
        %1487 = vmatprep.subr.mxu0 0.0
        %1488 = vmatpush1.msra.mxu0 %v1400
        %1489 = vmatprep.subr.mxu0 0.0
        %1490 = vmatpush1.msra.mxu0 %v1397
        %1491 = vmatprep.subr.mxu0 0.0
        %1492 = vmatpush1.msra.mxu0 %v1394
        %1493 = vmatprep.subr.mxu0 0.0
        %1494 = vmatpush1.msra.mxu0 %v1391
        %1495 = vmatprep.subr.mxu0 0.0
        %1496 = vmatpush1.msra.mxu0 %v1388
        %1497 = vmatprep.subr.mxu0 0.0
        %1498 = vmatpush1.msra.mxu0 %v1385
        %1499 = vmatprep.subr.mxu0 0.0
        %1500 = vmatpush1.msra.mxu0 %v1382
        %1501 = vmatprep.subr.mxu0 0.0
        %1502 = vmatpush1.msra.mxu0 %v1379
        %1503 = vmatprep.subr.mxu0 0.0
        %1504 = vmatpush1.msra.mxu0 %v1376
        %1505 = vmatprep.subr.mxu0 0.0
        %1506 = vmatpush1.msra.mxu0 %v1373
        %1507 = vmatprep.subr.mxu0 0.0
        %1508 = vmatpush1.msra.mxu0 %v1370
        %1509 = vmatprep.subr.mxu0 0.0
        %1510 = vmatpush1.msra.mxu0 %v1367
        %1511 = vmatprep.subr.mxu0 0.0
        %1512 = vmatpush1.msra.mxu0 %v1364
        %1513 = vmatprep.subr.mxu0 0.0
        %1514 = vmatpush2.msra.mxu0 0.0
        %1515 = vmatprep.subr.mxu0 0.0
        %1516 = vmatpush2.msra.mxu0 0.0
        %1517 = vmatprep.subr.mxu0 0.0
        %1518 = vmatpush2.msra.mxu0 0.0
        %1519 = vmatprep.subr.mxu0 0.0
        %1520 = vmatpush2.msra.mxu0 0.0
        %1521 = vmatprep.subr.mxu0 0.0
        %1522 = vmatpush2.msra.mxu0 0.0
        %1523 = vmatprep.subr.mxu0 0.0
        %1524 = vmatpush2.msra.mxu0 0.0
        %1525 = vmatprep.subr.mxu0 0.0
        %1526 = vmatpush2.msra.mxu0 0.0
        %1527 = vmatprep.subr.mxu0 0.0
        %1528 = vmatpush2.msra.mxu0 0.0
        %1529 = vmatprep.subr.mxu0 0.0
        %1530 = vmatpush2.msra.mxu0 0.0
        %1531 = vmatprep.subr.mxu0 0.0
        %1532 = vmatpush2.msra.mxu0 0.0
        %1533 = vmatprep.subr.mxu0 0.0
        %1534 = vmatpush2.msra.mxu0 0.0
        %1535 = vmatprep.subr.mxu0 0.0
        %1536 = vmatpush2.msra.mxu0 0.0
        %1537 = vmatprep.subr.mxu0 0.0
        %1538 = vmatpush2.msra.mxu0 0.0
        %1539 = vmatprep.subr.mxu0 0.0
        %1540 = vmatpush2.msra.mxu0 0.0
        %1541 = vmatprep.subr.mxu0 0.0
        %1542 = vmatpush2.msra.mxu0 0.0
        %1543 = vmatprep.subr.mxu0 0.0
        %1544 = vmatpush2.msra.mxu0 0.0
        %1545 = vmatprep.mubr.f32.mxu0 0.0
        %1546 = vmatmul.mubr.f32.gmra.mxu0 %v1357
        %v1547 = vpop.f32.mrf.mxu0
        %v1548 = vadd.f32 0.0, %v1547
        %v1549 = vpop.f32.mrf.mxu0
        %1550 = vdwg.mxu0
        %v1551 = vtanh.pop %v1477
        %v1552 = vld [vmem:[#allocation15] sm:$0x1]
        %v1553 = vadd.f32 %v1479, %v1552
        %v1554 = vld [vmem:[#allocation13] sm:$0x1]
        %v1555 = vmul.f32 %v1551, %v1554
        %vm1556 = vcmask 1040384
        %v1557 = vsel %vm1556, %v1555, 0.0
        %1558 = vadd.xlane.f32.xlu0 %v1557
        %v1559 = vpop.xlane.xlu0 %1558
        %v1560 = vld [vmem:[#allocation7] sm:$0x1]
        %v1561 = vxor.u32 %v1559, 2147483648
        %v1562 = vmul.f32 %v1561, 1.442695
        %v1563 = vpow.pop %v1562
        %v1564 = vadd.f32 %v1563, 1.0
        %v1565 = vrcp.pop %v1564
        %v1566 = vmul.f32 1.0, %v1565
        %v1567 = vmul.f32 %v1560, %v1566
        %v1568 = vadd.f32 %v1567, 0.5
        %v1569 = vcvt.f32.s32.to.zero.pseudo %v1568
        %vm1570 = vcmp.gt.s32.totalorder %v1569, 0
        %v1571 = vsel %vm1570, %v1569, 0
        %vm1572 = vcmp.lt.s32.totalorder %v1571, 15
        %v1573 = vsel %vm1572, %v1571, 15
        %v1574 = vlaneseq
        %v1575 = vshrl.u32 %v1574, 7
        %v1576 = vadd.s32 %v1575, 8
        %v1577 = vlaneseq
        %v1578 = vshrl.u32 %v1577, 7
        %v1579 = vsub.s32 0, %v1578
        %v1580 = vrot.slane %v1573, %v1579
        %1581 = vset.pattern.permute.xlu0 0
        %1582 = vperm.xlu0 %1581, %v1580
        %v1583 = vpop.permute.xlu0 %1582
        %vm1584 = vcmp.eq.s32.totalorder %v1575, %v1583
        %vm1585 = vcmp.eq.s32.totalorder %v1576, %v1583
        %v1586 = vld [vmem:[%s8] sm:$0xff]
        %v1587 = vld [vmem:[%s8 + $0x8] sm:$0xff]
        %v1588 = vsel %vm1584, %v1586, 0.0
        %v1589 = vsel %vm1585, %v1587, 0.0
        %v1590 = vadd.f32 %v1588, %v1589
        %v1591 = vrot.slane %v1590, 4
        %v1592 = vadd.f32 %v1590, %v1591
        %v1593 = vrot.slane %v1592, 2
        %v1594 = vadd.f32 %v1592, %v1593
        %v1595 = vrot.slane %v1594, 1
        %v1596 = vadd.f32 %v1594, %v1595
        %v1597 = vld [vmem:[%s7] sm:$0xff]
        %v1598 = vld [vmem:[%s7 + $0x8] sm:$0xff]
        %v1599 = vld [vmem:[%s7 + $0x10] sm:$0xff]
        %v1600 = vld [vmem:[%s7 + $0x18] sm:$0xff]
        %v1601 = vld [vmem:[%s7 + $0x20] sm:$0xff]
        %v1602 = vld [vmem:[%s7 + $0x28] sm:$0xff]
        %v1603 = vld [vmem:[%s7 + $0x30] sm:$0xff]
        %v1604 = vld [vmem:[%s7 + $0x38] sm:$0xff]
        %v1605 = vld [vmem:[%s7 + $0x40] sm:$0xff]
        %v1606 = vld [vmem:[%s7 + $0x48] sm:$0xff]
        %v1607 = vld [vmem:[%s7 + $0x50] sm:$0xff]
        %v1608 = vld [vmem:[%s7 + $0x58] sm:$0xff]
        %v1609 = vld [vmem:[%s7 + $0x60] sm:$0xff]
        %v1610 = vld [vmem:[%s7 + $0x68] sm:$0xff]
        %v1611 = vld [vmem:[%s7 + $0x70] sm:$0xff]
        %v1612 = vld [vmem:[%s7 + $0x78] sm:$0xff]
        %v1613 = vlaneseq
        %v1614 = vshrl.u32 %v1613, 7
        %v1615 = vsub.s32 0, %v1614
        %v1616 = vrot.slane %v1553, %v1615
        %v1617 = vadd.f32 %v1597, %v1616
        %v1618 = vadd.f32 %v1598, %v1616
        %v1619 = vadd.f32 %v1599, %v1616
        %v1620 = vadd.f32 %v1600, %v1616
        %v1621 = vadd.f32 %v1601, %v1616
        %v1622 = vadd.f32 %v1602, %v1616
        %v1623 = vadd.f32 %v1603, %v1616
        %v1624 = vadd.f32 %v1604, %v1616
        %v1625 = vadd.f32 %v1605, %v1616
        %v1626 = vadd.f32 %v1606, %v1616
        %v1627 = vadd.f32 %v1607, %v1616
        %v1628 = vadd.f32 %v1608, %v1616
        %v1629 = vadd.f32 %v1609, %v1616
        %v1630 = vadd.f32 %v1610, %v1616
        %v1631 = vadd.f32 %v1611, %v1616
        %v1632 = vadd.f32 %v1612, %v1616
        %v1633 = vmax.f32 %v1617, 0.0
        %v1634 = vmax.f32 %v1618, 0.0
        %v1635 = vmax.f32 %v1619, 0.0
        %v1636 = vmax.f32 %v1620, 0.0
        %v1637 = vmax.f32 %v1621, 0.0
        %v1638 = vmax.f32 %v1622, 0.0
        %v1639 = vmax.f32 %v1623, 0.0
        %v1640 = vmax.f32 %v1624, 0.0
        %v1641 = vmax.f32 %v1625, 0.0
        %v1642 = vmax.f32 %v1626, 0.0
        %v1643 = vmax.f32 %v1627, 0.0
        %v1644 = vmax.f32 %v1628, 0.0
        %v1645 = vmax.f32 %v1629, 0.0
        %v1646 = vmax.f32 %v1630, 0.0
        %v1647 = vmax.f32 %v1631, 0.0
        %v1648 = vmax.f32 %v1632, 0.0
        %v1649 = vld [vmem:[#allocation16] sm:$0x1]
        %1650 = vmatprep.subr.mxu0 0.0
        %1651 = vmatpush1.xpose.msra.mxu0 %v1648
        %1652 = vmatprep.subr.mxu0 0.0
        %1653 = vmatpush1.xpose.msra.mxu0 %v1647
        %1654 = vmatprep.subr.mxu0 0.0
        %1655 = vmatpush1.xpose.msra.mxu0 %v1646
        %1656 = vmatprep.subr.mxu0 0.0
        %1657 = vmatpush1.xpose.msra.mxu0 %v1645
        %1658 = vmatprep.subr.mxu0 0.0
        %1659 = vmatpush1.xpose.msra.mxu0 %v1644
        %1660 = vmatprep.subr.mxu0 0.0
        %1661 = vmatpush1.xpose.msra.mxu0 %v1643
        %1662 = vmatprep.subr.mxu0 0.0
        %1663 = vmatpush1.xpose.msra.mxu0 %v1642
        %1664 = vmatprep.subr.mxu0 0.0
        %1665 = vmatpush1.xpose.msra.mxu0 %v1641
        %1666 = vmatprep.subr.mxu0 0.0
        %1667 = vmatpush1.xpose.msra.mxu0 %v1640
        %1668 = vmatprep.subr.mxu0 0.0
        %1669 = vmatpush1.xpose.msra.mxu0 %v1639
        %1670 = vmatprep.subr.mxu0 0.0
        %1671 = vmatpush1.xpose.msra.mxu0 %v1638
        %1672 = vmatprep.subr.mxu0 0.0
        %1673 = vmatpush1.xpose.msra.mxu0 %v1637
        %1674 = vmatprep.subr.mxu0 0.0
        %1675 = vmatpush1.xpose.msra.mxu0 %v1636
        %1676 = vmatprep.subr.mxu0 0.0
        %1677 = vmatpush1.xpose.msra.mxu0 %v1635
        %1678 = vmatprep.subr.mxu0 0.0
        %1679 = vmatpush1.xpose.msra.mxu0 %v1634
        %1680 = vmatprep.subr.mxu0 0.0
        %1681 = vmatpush1.xpose.msra.mxu0 %v1633
        %1682 = vmatprep.subr.mxu0 0.0
        %1683 = vmatpush2.xpose.msra.mxu0 0.0
        %1684 = vmatprep.subr.mxu0 0.0
        %1685 = vmatpush2.xpose.msra.mxu0 0.0
        %1686 = vmatprep.subr.mxu0 0.0
        %1687 = vmatpush2.xpose.msra.mxu0 0.0
        %1688 = vmatprep.subr.mxu0 0.0
        %1689 = vmatpush2.xpose.msra.mxu0 0.0
        %1690 = vmatprep.subr.mxu0 0.0
        %1691 = vmatpush2.xpose.msra.mxu0 0.0
        %1692 = vmatprep.subr.mxu0 0.0
        %1693 = vmatpush2.xpose.msra.mxu0 0.0
        %1694 = vmatprep.subr.mxu0 0.0
        %1695 = vmatpush2.xpose.msra.mxu0 0.0
        %1696 = vmatprep.subr.mxu0 0.0
        %1697 = vmatpush2.xpose.msra.mxu0 0.0
        %1698 = vmatprep.subr.mxu0 0.0
        %1699 = vmatpush2.xpose.msra.mxu0 0.0
        %1700 = vmatprep.subr.mxu0 0.0
        %1701 = vmatpush2.xpose.msra.mxu0 0.0
        %1702 = vmatprep.subr.mxu0 0.0
        %1703 = vmatpush2.xpose.msra.mxu0 0.0
        %1704 = vmatprep.subr.mxu0 0.0
        %1705 = vmatpush2.xpose.msra.mxu0 0.0
        %1706 = vmatprep.subr.mxu0 0.0
        %1707 = vmatpush2.xpose.msra.mxu0 0.0
        %1708 = vmatprep.subr.mxu0 0.0
        %1709 = vmatpush2.xpose.msra.mxu0 0.0
        %1710 = vmatprep.subr.mxu0 0.0
        %1711 = vmatpush2.xpose.msra.mxu0 0.0
        %1712 = vmatprep.subr.mxu0 0.0
        %1713 = vmatpush2.xpose.msra.mxu0 0.0
        %1714 = vmatprep.mubr.f32.mxu0 0.0
        %1715 = vmatmul.mubr.f32.gmra.mxu0 %v1649
        %v1716 = vpop.f32.mrf.mxu0
        %v1717 = vadd.f32 0.0, %v1716
        %v1718 = vpop.f32.mrf.mxu0
        %1719 = vdwg.mxu0
        %v1720 = vlaneseq
        %v1721 = vand.u32 %v1720, 127
        %vm1722 = vcmp.lt.s32.totalorder %v1721, 16
        %v1723 = vsel %vm1722, %v1717, -1e+30
        %v1724 = vsel %vm1556, %v1723, -inf
        %1725 = vmax.xlane.f32.xlu0 %v1724
        %v1726 = vpop.xlane.xlu0 %1725
        %v1727 = vsub.f32 %v1723, %v1726
        %v1728 = vmul.f32 %v1727, 1.442695
        %v1729 = vpow.pop %v1728
        %v1730 = vsel %vm1556, %v1729, 0.0
        %1731 = vadd.xlane.f32.xlu0 %v1730
        %v1732 = vpop.xlane.xlu0 %1731
        %v1733 = vrcp.pop %v1732
        %v1734 = vmul.f32 %v1729, %v1733
        %v1735 = vmul.f32 %v1734, %v1596
        %v1736 = vsel %vm1556, %v1735, 0.0
        %1737 = vadd.xlane.f32.xlu0 %v1736
        %v1738 = vpop.xlane.xlu0 %1737
        %v1739 = vmax.f32 %v1738, 1e-30
        %v1740 = vrcp.pop %v1739
        %v1741 = vmul.f32 %v1735, %v1740
        %1742 = vst [vmem:[%s818] sm:$0x1] %v1741
        %v1743 = vld [vmem:[%s6] sm:$0xff]
        %v1744 = vld [vmem:[%s6 + $0x8] sm:$0xff]
        %v1745 = vld [vmem:[%s6 + $0x10] sm:$0xff]
        %v1746 = vld [vmem:[%s6 + $0x18] sm:$0xff]
        %v1747 = vld [vmem:[%s6 + $0x20] sm:$0xff]
        %v1748 = vld [vmem:[%s6 + $0x28] sm:$0xff]
        %v1749 = vld [vmem:[%s6 + $0x30] sm:$0xff]
        %v1750 = vld [vmem:[%s6 + $0x38] sm:$0xff]
        %v1751 = vld [vmem:[%s6 + $0x40] sm:$0xff]
        %v1752 = vld [vmem:[%s6 + $0x48] sm:$0xff]
        %v1753 = vld [vmem:[%s6 + $0x50] sm:$0xff]
        %v1754 = vld [vmem:[%s6 + $0x58] sm:$0xff]
        %v1755 = vld [vmem:[%s6 + $0x60] sm:$0xff]
        %v1756 = vld [vmem:[%s6 + $0x68] sm:$0xff]
        %v1757 = vld [vmem:[%s6 + $0x70] sm:$0xff]
        %v1758 = vld [vmem:[%s6 + $0x78] sm:$0xff]
        %1759 = vmatprep.subr.mxu0 0.0
        %1760 = vmatpush1.msra.mxu0 %v1758
        %1761 = vmatprep.subr.mxu0 0.0
        %1762 = vmatpush1.msra.mxu0 %v1757
        %1763 = vmatprep.subr.mxu0 0.0
        %1764 = vmatpush1.msra.mxu0 %v1756
        %1765 = vmatprep.subr.mxu0 0.0
        %1766 = vmatpush1.msra.mxu0 %v1755
        %1767 = vmatprep.subr.mxu0 0.0
        %1768 = vmatpush1.msra.mxu0 %v1754
        %1769 = vmatprep.subr.mxu0 0.0
        %1770 = vmatpush1.msra.mxu0 %v1753
        %1771 = vmatprep.subr.mxu0 0.0
        %1772 = vmatpush1.msra.mxu0 %v1752
        %1773 = vmatprep.subr.mxu0 0.0
        %1774 = vmatpush1.msra.mxu0 %v1751
        %1775 = vmatprep.subr.mxu0 0.0
        %1776 = vmatpush1.msra.mxu0 %v1750
        %1777 = vmatprep.subr.mxu0 0.0
        %1778 = vmatpush1.msra.mxu0 %v1749
        %1779 = vmatprep.subr.mxu0 0.0
        %1780 = vmatpush1.msra.mxu0 %v1748
        %1781 = vmatprep.subr.mxu0 0.0
        %1782 = vmatpush1.msra.mxu0 %v1747
        %1783 = vmatprep.subr.mxu0 0.0
        %1784 = vmatpush1.msra.mxu0 %v1746
        %1785 = vmatprep.subr.mxu0 0.0
        %1786 = vmatpush1.msra.mxu0 %v1745
        %1787 = vmatprep.subr.mxu0 0.0
        %1788 = vmatpush1.msra.mxu0 %v1744
        %1789 = vmatprep.subr.mxu0 0.0
        %1790 = vmatpush1.msra.mxu0 %v1743
        %1791 = vmatprep.subr.mxu0 0.0
        %1792 = vmatpush2.msra.mxu0 0.0
        %1793 = vmatprep.subr.mxu0 0.0
        %1794 = vmatpush2.msra.mxu0 0.0
        %1795 = vmatprep.subr.mxu0 0.0
        %1796 = vmatpush2.msra.mxu0 0.0
        %1797 = vmatprep.subr.mxu0 0.0
        %1798 = vmatpush2.msra.mxu0 0.0
        %1799 = vmatprep.subr.mxu0 0.0
        %1800 = vmatpush2.msra.mxu0 0.0
        %1801 = vmatprep.subr.mxu0 0.0
        %1802 = vmatpush2.msra.mxu0 0.0
        %1803 = vmatprep.subr.mxu0 0.0
        %1804 = vmatpush2.msra.mxu0 0.0
        %1805 = vmatprep.subr.mxu0 0.0
        %1806 = vmatpush2.msra.mxu0 0.0
        %1807 = vmatprep.subr.mxu0 0.0
        %1808 = vmatpush2.msra.mxu0 0.0
        %1809 = vmatprep.subr.mxu0 0.0
        %1810 = vmatpush2.msra.mxu0 0.0
        %1811 = vmatprep.subr.mxu0 0.0
        %1812 = vmatpush2.msra.mxu0 0.0
        %1813 = vmatprep.subr.mxu0 0.0
        %1814 = vmatpush2.msra.mxu0 0.0
        %1815 = vmatprep.subr.mxu0 0.0
        %1816 = vmatpush2.msra.mxu0 0.0
        %1817 = vmatprep.subr.mxu0 0.0
        %1818 = vmatpush2.msra.mxu0 0.0
        %1819 = vmatprep.subr.mxu0 0.0
        %1820 = vmatpush2.msra.mxu0 0.0
        %1821 = vmatprep.subr.mxu0 0.0
        %1822 = vmatpush2.msra.mxu0 0.0
        %1823 = vmatprep.mubr.f32.mxu0 0.0
        %1824 = vmatmul.mubr.f32.gmra.mxu0 %v1741
        %v1825 = vpop.f32.mrf.mxu0
        %v1826 = vadd.f32 0.0, %v1825
        %v1827 = vpop.f32.mrf.mxu0
        %1828 = vdwg.mxu0
        %v1829 = vld [vmem:[%s15] sm:$0xff]
        %v1830 = vld [vmem:[%s15 + $0x8] sm:$0xff]
        %v1831 = vld [vmem:[%s15 + $0x10] sm:$0xff]
        %v1832 = vld [vmem:[%s15 + $0x18] sm:$0xff]
        %v1833 = vld [vmem:[%s15 + $0x20] sm:$0xff]
        %v1834 = vld [vmem:[%s15 + $0x28] sm:$0xff]
        %v1835 = vld [vmem:[%s15 + $0x30] sm:$0xff]
        %v1836 = vld [vmem:[%s15 + $0x38] sm:$0xff]
        %v1837 = vld [vmem:[%s15 + $0x40] sm:$0xff]
        %v1838 = vld [vmem:[%s15 + $0x48] sm:$0xff]
        %v1839 = vld [vmem:[%s15 + $0x50] sm:$0xff]
        %v1840 = vld [vmem:[%s15 + $0x58] sm:$0xff]
        %v1841 = vld [vmem:[%s15 + $0x60] sm:$0xff]
        %v1842 = vld [vmem:[%s15 + $0x68] sm:$0xff]
        %v1843 = vld [vmem:[%s15 + $0x70] sm:$0xff]
        %v1844 = vld [vmem:[%s15 + $0x78] sm:$0xff]
        %1845 = vmatprep.subr.mxu0 0.0
        %1846 = vmatpush1.msra.mxu0 %v1844
        %1847 = vmatprep.subr.mxu0 0.0
        %1848 = vmatpush1.msra.mxu0 %v1843
        %1849 = vmatprep.subr.mxu0 0.0
        %1850 = vmatpush1.msra.mxu0 %v1842
        %1851 = vmatprep.subr.mxu0 0.0
        %1852 = vmatpush1.msra.mxu0 %v1841
        %1853 = vmatprep.subr.mxu0 0.0
        %1854 = vmatpush1.msra.mxu0 %v1840
        %1855 = vmatprep.subr.mxu0 0.0
        %1856 = vmatpush1.msra.mxu0 %v1839
        %1857 = vmatprep.subr.mxu0 0.0
        %1858 = vmatpush1.msra.mxu0 %v1838
        %1859 = vmatprep.subr.mxu0 0.0
        %1860 = vmatpush1.msra.mxu0 %v1837
        %1861 = vmatprep.subr.mxu0 0.0
        %1862 = vmatpush1.msra.mxu0 %v1836
        %1863 = vmatprep.subr.mxu0 0.0
        %1864 = vmatpush1.msra.mxu0 %v1835
        %1865 = vmatprep.subr.mxu0 0.0
        %1866 = vmatpush1.msra.mxu0 %v1834
        %1867 = vmatprep.subr.mxu0 0.0
        %1868 = vmatpush1.msra.mxu0 %v1833
        %1869 = vmatprep.subr.mxu0 0.0
        %1870 = vmatpush1.msra.mxu0 %v1832
        %1871 = vmatprep.subr.mxu0 0.0
        %1872 = vmatpush1.msra.mxu0 %v1831
        %1873 = vmatprep.subr.mxu0 0.0
        %1874 = vmatpush1.msra.mxu0 %v1830
        %1875 = vmatprep.subr.mxu0 0.0
        %1876 = vmatpush1.msra.mxu0 %v1829
        %1877 = vmatprep.subr.mxu0 0.0
        %1878 = vmatpush2.msra.mxu0 0.0
        %1879 = vmatprep.subr.mxu0 0.0
        %1880 = vmatpush2.msra.mxu0 0.0
        %1881 = vmatprep.subr.mxu0 0.0
        %1882 = vmatpush2.msra.mxu0 0.0
        %1883 = vmatprep.subr.mxu0 0.0
        %1884 = vmatpush2.msra.mxu0 0.0
        %1885 = vmatprep.subr.mxu0 0.0
        %1886 = vmatpush2.msra.mxu0 0.0
        %1887 = vmatprep.subr.mxu0 0.0
        %1888 = vmatpush2.msra.mxu0 0.0
        %1889 = vmatprep.subr.mxu0 0.0
        %1890 = vmatpush2.msra.mxu0 0.0
        %1891 = vmatprep.subr.mxu0 0.0
        %1892 = vmatpush2.msra.mxu0 0.0
        %1893 = vmatprep.subr.mxu0 0.0
        %1894 = vmatpush2.msra.mxu0 0.0
        %1895 = vmatprep.subr.mxu0 0.0
        %1896 = vmatpush2.msra.mxu0 0.0
        %1897 = vmatprep.subr.mxu0 0.0
        %1898 = vmatpush2.msra.mxu0 0.0
        %1899 = vmatprep.subr.mxu0 0.0
        %1900 = vmatpush2.msra.mxu0 0.0
        %1901 = vmatprep.subr.mxu0 0.0
        %1902 = vmatpush2.msra.mxu0 0.0
        %1903 = vmatprep.subr.mxu0 0.0
        %1904 = vmatpush2.msra.mxu0 0.0
        %1905 = vmatprep.subr.mxu0 0.0
        %1906 = vmatpush2.msra.mxu0 0.0
        %1907 = vmatprep.subr.mxu0 0.0
        %1908 = vmatpush2.msra.mxu0 0.0
        %1909 = vmatprep.mubr.f32.mxu0 0.0
        %1910 = vmatmul.mubr.f32.gmra.mxu0 %v1826
        %v1911 = vpop.f32.mrf.mxu0
        %v1912 = vadd.f32 %v1548, %v1911
        %v1913 = vpop.f32.mrf.mxu0
        %1914 = vdwg.mxu0
        %v1915 = vld [vmem:[#allocation18] sm:$0x1]
        %v1916 = vadd.f32 %v1912, %v1915
        %v1917 = vtanh.pop %v1916
        %1918 = vst [vmem:[#allocation4] sm:$0x1] %v1917
        %1919 = vst [vmem:[%s821] sm:$0x1] %v1917
        %v1920 = vld [vmem:[#allocation19] sm:$0xff]
        %v1921 = vld [vmem:[#allocation19 + $0x8] sm:$0xff]
        %v1922 = vld [vmem:[#allocation19 + $0x10] sm:$0xff]
        %v1923 = vld [vmem:[#allocation19 + $0x18] sm:$0xff]
        %v1924 = vld [vmem:[#allocation19 + $0x20] sm:$0xff]
        %v1925 = vld [vmem:[#allocation19 + $0x28] sm:$0xff]
        %v1926 = vld [vmem:[#allocation19 + $0x30] sm:$0xff]
        %v1927 = vld [vmem:[#allocation19 + $0x38] sm:$0xff]
        %v1928 = vld [vmem:[#allocation19 + $0x40] sm:$0xff]
        %v1929 = vld [vmem:[#allocation19 + $0x48] sm:$0xff]
        %v1930 = vld [vmem:[#allocation19 + $0x50] sm:$0xff]
        %v1931 = vld [vmem:[#allocation19 + $0x58] sm:$0xff]
        %v1932 = vld [vmem:[#allocation19 + $0x60] sm:$0xff]
        %v1933 = vld [vmem:[#allocation19 + $0x68] sm:$0xff]
        %v1934 = vld [vmem:[#allocation19 + $0x70] sm:$0xff]
        %v1935 = vld [vmem:[#allocation19 + $0x78] sm:$0xff]
        %v1936 = vld [vmem:[#allocation21] sm:$0x1]
        %1937 = vmatprep.subr.mxu0 0.0
        %1938 = vmatpush1.msra.mxu0 %v1935
        %1939 = vmatprep.subr.mxu0 0.0
        %1940 = vmatpush1.msra.mxu0 %v1934
        %1941 = vmatprep.subr.mxu0 0.0
        %1942 = vmatpush1.msra.mxu0 %v1933
        %1943 = vmatprep.subr.mxu0 0.0
        %1944 = vmatpush1.msra.mxu0 %v1932
        %1945 = vmatprep.subr.mxu0 0.0
        %1946 = vmatpush1.msra.mxu0 %v1931
        %1947 = vmatprep.subr.mxu0 0.0
        %1948 = vmatpush1.msra.mxu0 %v1930
        %1949 = vmatprep.subr.mxu0 0.0
        %1950 = vmatpush1.msra.mxu0 %v1929
        %1951 = vmatprep.subr.mxu0 0.0
        %1952 = vmatpush1.msra.mxu0 %v1928
        %1953 = vmatprep.subr.mxu0 0.0
        %1954 = vmatpush1.msra.mxu0 %v1927
        %1955 = vmatprep.subr.mxu0 0.0
        %1956 = vmatpush1.msra.mxu0 %v1926
        %1957 = vmatprep.subr.mxu0 0.0
        %1958 = vmatpush1.msra.mxu0 %v1925
        %1959 = vmatprep.subr.mxu0 0.0
        %1960 = vmatpush1.msra.mxu0 %v1924
        %1961 = vmatprep.subr.mxu0 0.0
        %1962 = vmatpush1.msra.mxu0 %v1923
        %1963 = vmatprep.subr.mxu0 0.0
        %1964 = vmatpush1.msra.mxu0 %v1922
        %1965 = vmatprep.subr.mxu0 0.0
        %1966 = vmatpush1.msra.mxu0 %v1921
        %1967 = vmatprep.subr.mxu0 0.0
        %1968 = vmatpush1.msra.mxu0 %v1920
        %1969 = vmatprep.subr.mxu0 0.0
        %1970 = vmatpush2.msra.mxu0 0.0
        %1971 = vmatprep.subr.mxu0 0.0
        %1972 = vmatpush2.msra.mxu0 0.0
        %1973 = vmatprep.subr.mxu0 0.0
        %1974 = vmatpush2.msra.mxu0 0.0
        %1975 = vmatprep.subr.mxu0 0.0
        %1976 = vmatpush2.msra.mxu0 0.0
        %1977 = vmatprep.subr.mxu0 0.0
        %1978 = vmatpush2.msra.mxu0 0.0
        %1979 = vmatprep.subr.mxu0 0.0
        %1980 = vmatpush2.msra.mxu0 0.0
        %1981 = vmatprep.subr.mxu0 0.0
        %1982 = vmatpush2.msra.mxu0 0.0
        %1983 = vmatprep.subr.mxu0 0.0
        %1984 = vmatpush2.msra.mxu0 0.0
        %1985 = vmatprep.subr.mxu0 0.0
        %1986 = vmatpush2.msra.mxu0 0.0
        %1987 = vmatprep.subr.mxu0 0.0
        %1988 = vmatpush2.msra.mxu0 0.0
        %1989 = vmatprep.subr.mxu0 0.0
        %1990 = vmatpush2.msra.mxu0 0.0
        %1991 = vmatprep.subr.mxu0 0.0
        %1992 = vmatpush2.msra.mxu0 0.0
        %1993 = vmatprep.subr.mxu0 0.0
        %1994 = vmatpush2.msra.mxu0 0.0
        %1995 = vmatprep.subr.mxu0 0.0
        %1996 = vmatpush2.msra.mxu0 0.0
        %1997 = vmatprep.subr.mxu0 0.0
        %1998 = vmatpush2.msra.mxu0 0.0
        %1999 = vmatprep.subr.mxu0 0.0
        %2000 = vmatpush2.msra.mxu0 0.0
        %2001 = vmatprep.mubr.f32.mxu0 0.0
        %2002 = vmatmul.mubr.f32.gmra.mxu0 %v1917
        %v2003 = vpop.f32.mrf.mxu0
        %v2004 = vadd.f32 %v1936, %v2003
        %v2005 = vpop.f32.mrf.mxu0
        %2006 = vdwg.mxu0
        %vm2007 = vcmp.lt.s32.totalorder %v1721, 64
        %v2008 = vsel %vm2007, %v2004, -1e+30
        %v2009 = vsel %vm1556, %v2008, -inf
        %2010 = vmax.xlane.f32.xlu0 %v2009
        %v2011 = vpop.xlane.xlu0 %2010
        %v2012 = vsub.f32 %v2008, %v2011
        %v2013 = vmul.f32 %v2012, 1.442695
        %v2014 = vpow.pop %v2013
        %v2015 = vsel %vm1556, %v2014, 0.0
        %2016 = vadd.xlane.f32.xlu0 %v2015
        %v2017 = vpop.xlane.xlu0 %2016
        %v2018 = vlog2.pop %v2017
        %v2019 = vmul.f32 %v2018, 0.6931472
        %v2020 = vadd.f32 %v2019, %v2011
        %v2021 = vsub.f32 %v2008, %v2020
        %2022 = vst [vmem:[%s815] sm:$0x1] %v2021
        %p2023 = scmp.lt.s32.totalorder %s50, 5
        %s2024 = scalar_select %p2023, %s50, 5
        %s2025 = scalar_lea.vmem %s19, %s2024
        %p2026 = scmp.lt.s32.totalorder %s50, 5
        %s2027 = scalar_select %p2026, %s50, 5
        %s2028 = scalar_lea.vmem %s20, %s2027
        %p2029 = scmp.lt.s32.totalorder %s50, 5
        %s2030 = scalar_select %p2029, %s50, 5
        %s2031 = scalar_lea.vmem %s21, %s2030
        // Predicated region
        $region133: #{decode.1} parent=91 // pred_check
          %p2032 = pneg %p453
        $region134: #{decode.1} parent=91 // pred_check_branch
          %2034 = sbr.rel (%p2032) target = $region136
        $region135: #{decode.1} parent=91 // pred_region
          _
        $region136: #{decode.1} parent=91 // pred_fallthru
          _
        // Predicated region
        $region137: #{decode.1} parent=91 // pred_check
          %p2035 = pneg %p479
        $region138: #{decode.1} parent=91 // pred_check_branch
          %2037 = sbr.rel (%p2035) target = $region140
        $region139: #{decode.1} parent=91 // pred_region
          _
        $region140: #{decode.1} parent=91 // pred_fallthru
          _
        // Predicated region
        $region141: #{decode.1} parent=91 // pred_check
          %p2038 = pneg %p505
        $region142: #{decode.1} parent=91 // pred_check_branch
          %2040 = sbr.rel (%p2038) target = $region144
        $region143: #{decode.1} parent=91 // pred_region
          _
        $region144: #{decode.1} parent=91 // pred_fallthru
          _
        // Predicated region
        $region145: #{decode.1} parent=91 // pred_check
          %p2041 = pneg %p526
        $region146: #{decode.1} parent=91 // pred_check_branch
          %2043 = sbr.rel (%p2041) target = $region148
        $region147: #{decode.1} parent=91 // pred_region
          _
        $region148: #{decode.1} parent=91 // pred_fallthru
          _
        // Predicated region
        $region149: #{decode.1} parent=91 // pred_check
          %p2044 = pneg %p547
        $region150: #{decode.1} parent=91 // pred_check_branch
          %2046 = sbr.rel (%p2044) target = $region152
        $region151: #{decode.1} parent=91 // pred_region
          _
        $region152: #{decode.1} parent=91 // pred_fallthru
          _
        // Predicated region
        $region153: #{decode.1} parent=91 // pred_check
          %p2047 = pneg %p526
        $region154: #{decode.1} parent=91 // pred_check_branch
          %2049 = sbr.rel (%p2047) target = $region156
        $region155: #{decode.1} parent=91 // pred_region
          _
        $region156: #{decode.1} parent=91 // pred_fallthru
          _
        // Predicated region
        $region157: #{decode.1} parent=91 // pred_check
          %p2050 = pneg %p547
        $region158: #{decode.1} parent=91 // pred_check_branch
          %2052 = sbr.rel (%p2050) target = $region160
        $region159: #{decode.1} parent=91 // pred_region
          _
        $region160: #{decode.1} parent=91 // pred_fallthru
          _
      $region92: #{decode.1} parent=5 // pred_fallthru
        _
      %p2053 = scmp.le.s32.totalorder 2, %s45
      // Predicated region
      $region161: #{decode.1} parent=5 // pred_check
        %p2054 = pneg %p2053
      $region162: #{decode.1} parent=5 // pred_check_branch
        %2056 = sbr.rel (%p2054) target = $region164
      $region163: #{decode.1} parent=5 // pred_region
        %s2057 = ssub.s32 %s45, 2
        // Predicated region
        $region165: #{decode.1} parent=163 // pred_check
          %p2058 = pneg %p459
        $region166: #{decode.1} parent=163 // pred_check_branch
          %2060 = sbr.rel (%p2058) target = $region168
        $region167: #{decode.1} parent=163 // pred_region
          %p2061 = scmp.lt.s32.totalorder %s51, 5
          %s2062 = scalar_select %p2061, %s51, 5
          %s2063 = scalar_lea.vmem %s19, %s2062
        $region168: #{decode.1} parent=163 // pred_fallthru
          _
        // Predicated region
        $region169: #{decode.1} parent=163 // pred_check
          %p2064 = pneg %p485
        $region170: #{decode.1} parent=163 // pred_check_branch
          %2066 = sbr.rel (%p2064) target = $region172
        $region171: #{decode.1} parent=163 // pred_region
          %p2067 = scmp.lt.s32.totalorder %s51, 5
          %s2068 = scalar_select %p2067, %s51, 5
          %s2069 = scalar_lea.vmem %s20, %s2068
        $region172: #{decode.1} parent=163 // pred_fallthru
          _
        // Predicated region
        $region173: #{decode.1} parent=163 // pred_check
          %p2070 = pneg %p511
        $region174: #{decode.1} parent=163 // pred_check_branch
          %2072 = sbr.rel (%p2070) target = $region176
        $region175: #{decode.1} parent=163 // pred_region
          %p2073 = scmp.lt.s32.totalorder %s51, 5
          %s2074 = scalar_select %p2073, %s51, 5
          %s2075 = scalar_lea.vmem %s21, %s2074
        $region176: #{decode.1} parent=163 // pred_fallthru
          _
      $region164: #{decode.1} parent=5 // pred_fallthru
        _
    $region6: #{decode.1} parent=1 // loop_footer
      %s49 = sadd.s32 1, %s45
    $region7: #{decode.1} parent=1 // loop_footer_branch
      %44 = sbr.rel target = $region3
    $region8: #{decode.1} parent=1 // loop_exit
      _
    %2076 = vsyncpa [#allocation9], 1
    %s2077 = scalar_lea.sflag [#allocation9], 1
    %2078 = vsyncpa %s2077, 1
    %2079 = vsyncpa [#allocation11], 1
    %2080 = vsyncpa [#allocation14], 1
    %2081 = vsyncpa [#allocation17], 1
    %2082 = vsyncpa [#allocation20], 1

</llo_original>
